<compile_context>
chip_gen: v7x
topology: tpu7x:2x2x1
jax: 0.10.0
libtpu: 0.0.40
codegen_flags: <defaults>
</compile_context>

<pallas_src>
import functools
import math

import jax
import jax.numpy as jnp
from jax.experimental import pallas as pl
from jax.experimental.pallas import tpu as pltpu


# ----------------------------------------------------------------------------
# VMEM budget / tiling helpers
# ----------------------------------------------------------------------------
@functools.lru_cache(maxsize=None)
def _vmem_limit_bytes():
    """Per-kernel scoped VMEM limit: ~7/8 of physical, capped at 100 MiB.
    (v5e/v6e: 100 MiB of 128 MiB; v7x: 56 MiB of 64 MiB; safe fallback 56 MiB)."""
    cap = 64 * 1024 * 1024
    try:
        cap = int(pltpu.get_tpu_info().vmem_capacity_bytes)
    except Exception:
        pass
    return int(min(cap - cap // 8, 100 * 1024 * 1024))


def _budget():
    return (_vmem_limit_bytes() * 7) // 10


@functools.lru_cache(maxsize=None)
def _buffered_one_supported():
    """Probe whether pipeline_mode=pl.Buffered(1) (single-buffered resident
    operands) works on this JAX/Mosaic build; fall back to default buffering."""
    try:
        def k(x_ref, o_ref):
            o_ref[...] = x_ref[...] * 2.0

        f = pl.pallas_call(
            k,
            out_shape=jax.ShapeDtypeStruct((16, 128), jnp.float32),
            grid=(2,),
            in_specs=[pl.BlockSpec((8, 128), lambda i: (0, 0),
                                   pipeline_mode=pl.Buffered(1))],
            out_specs=pl.BlockSpec((8, 128), lambda i: (i, 0)),
        )
        jax.block_until_ready(f(jnp.zeros((8, 128), jnp.float32)))
        return True
    except Exception:
        return False


def _const_spec(shape):
    """BlockSpec for an operand that is constant across the whole grid.
    Single-buffered when supported (pure VMEM headroom; no pipelining needed)."""
    index_map = lambda *_: (0,) * len(shape)
    if _buffered_one_supported():
        return pl.BlockSpec(shape, index_map, pipeline_mode=pl.Buffered(1))
    return pl.BlockSpec(shape, index_map)


def _row_tile(m):
    """Largest row tile (multiple of 8) that divides m; falls back to m."""
    for t in (512, 256, 128, 64, 32, 16, 8):
        if t <= m and m % t == 0:
            return t
    return m


def _mha_vmem_estimate(tq, lk, d):
    bf, f4 = 2, 4
    weights = 4 * d * d * bf + 6 * d * f4            # wq, wkv, wo (1-buffered) + biases/LN
    xkv = 2 * lk * d * bf                            # full K/V source (2-buffered)
    scratch = (2 * lk * d + 2 * tq * d) * bf         # K, V, Q, ctx scratch
    streamed = 2 * (2 * tq * d * bf + tq * f4 + lk * f4)   # x_q + out + validity
    live = 2 * tq * lk * f4 + 2 * tq * d * f4        # scores/probs + q_all / y
    return weights + xkv + scratch + streamed + live


def _pick_q_tile(lq, lk, d, budget):
    cands = [t for t in (512, 256, 128, 64, 32, 16, 8) if t <= lq and lq % t == 0]
    if not cands:
        return lq
    for t in cands:
        if _mha_vmem_estimate(t, lk, d) <= budget:
            return t
    return cands[-1]


def _pick_ffn_tile(m, d, h, budget):
    cands = [t for t in (1024, 512, 256, 128, 64, 32, 16, 8) if t <= m and m % t == 0]
    if not cands:
        return m
    for t in cands:
        est = (2 * d * h * 2 + (h + 3 * d) * 4       # weights (1-buffered) + biases/LN
               + 2 * 2 * t * d * 2                   # x in + out (2-buffered, bf16)
               + t * h * 4 + 2 * t * d * 4)          # live hidden (f32) + y
        if est <= budget:
            return t
    return cands[-1]


def _pick_col_tile(n, tm, d, budget):
    cands = [t for t in (4096, 2048, 1024, 512, 256, 128) if t <= n and n % t == 0]
    if not cands:
        return n
    for t in cands:
        est = 2 * (d * t * 2 + t * 4 + tm * t * 4) + 2 * tm * d * 2
        if est <= budget:
            return t
    return cands[-1]


# ----------------------------------------------------------------------------
# Pallas kernels
# ----------------------------------------------------------------------------
def _mha_ln_kernel(xq_ref, xkv_ref, qv_ref, kv_ref,
                   wq_ref, bq_ref, wkv_ref, bkv_ref, wo_ref, bo_ref,
                   g_ref, b_ref, o_ref,
                   q_sc, k_sc, v_sc, ctx_sc,
                   *, n_head, scale, causal):
    """Fused MHA block for one (batch, query-tile) grid step.

    Computes LayerNorm( x_q + (MHA(x_q, x_kv, x_kv, mask) @ Wo + bo) ) on a
    (TQ, D) query tile.  K/V for the full key sequence are projected once per
    batch element (first query tile) and kept resident in VMEM scratch.  The
    pad(+causal) mask is rebuilt in-kernel from O(L) validity vectors.
    """
    f32, bf16 = jnp.float32, jnp.bfloat16
    TQ, D = xq_ref.shape
    Lk = xkv_ref.shape[0]
    dh = D // n_head
    qi = pl.program_id(1)

    # --- K/V projection (fused (D, 2D) matmul), once per batch element -------
    @pl.when(qi == 0)
    def _():
        kv_all = (jnp.dot(xkv_ref[...], wkv_ref[...], preferred_element_type=f32)
                  + bkv_ref[...])                                   # (Lk, 2D) f32
        k_sc[...] = kv_all[:, :D].astype(bf16)
        v_sc[...] = kv_all[:, D:].astype(bf16)

    # --- Q projection for this tile (single full-D matmul) -------------------
    q_sc[...] = (jnp.dot(xq_ref[...], wq_ref[...], preferred_element_type=f32)
                 + bq_ref[...]).astype(bf16)

    # --- pad (+ causal) mask from O(L) validity vectors -----------------------
    allow = (qv_ref[...] > 0.5) & (kv_ref[...] > 0.5)               # (TQ, Lk)
    if causal:
        ri = jax.lax.broadcasted_iota(jnp.int32, (TQ, Lk), 0) + qi * TQ
        ci = jax.lax.broadcasted_iota(jnp.int32, (TQ, Lk), 1)
        allow = allow & (ri >= ci)

    # --- per-head attention; ctx written into a (TQ, D) scratch ---------------
    for h in range(n_head):
        sl = slice(h * dh, (h + 1) * dh)
        s = jax.lax.dot_general(q_sc[:, sl], k_sc[:, sl],
                                (((1,), (1,)), ((), ())),
                                preferred_element_type=f32) * scale
        s = jnp.where(allow, s, jnp.float32(-10000.0))              # masked_fill
        s = s - jnp.max(s, axis=-1, keepdims=True)
        p = jnp.exp(s)
        # approx=True uses the otherwise-idle EUP reciprocal for the softmax norm.
        p = p * pl.reciprocal(jnp.sum(p, axis=-1, keepdims=True), approx=True)
        ctx_sc[:, sl] = jnp.dot(p.astype(bf16), v_sc[:, sl],
                                preferred_element_type=f32).astype(bf16)

    # --- single full-D output projection + residual + LayerNorm (f32 math) ----
    y = (jnp.dot(ctx_sc[...], wo_ref[...], preferred_element_type=f32)
         + bo_ref[...] + xq_ref[...].astype(f32))
    mean = jnp.mean(y, axis=-1, keepdims=True)
    var = jnp.mean((y - mean) ** 2, axis=-1, keepdims=True)          # biased var
    o_ref[...] = ((y - mean) * jax.lax.rsqrt(var + 1e-12) * g_ref[...]
                  + b_ref[...]).astype(o_ref.dtype)


def _ffn_ln_kernel(x_ref, w1_ref, b1_ref, w2_ref, b2_ref, g_ref, b_ref, o_ref):
    """Fused positionwise FFN + residual add + LayerNorm on a (TM, D) row tile."""
    f32, bf16 = jnp.float32, jnp.bfloat16
    x = x_ref[...]                                                   # (TM, D) bf16
    h = jnp.dot(x, w1_ref[...], preferred_element_type=f32) + b1_ref[...]
    h = jnp.maximum(h, 0.0)
    y = (jnp.dot(h.astype(bf16), w2_ref[...], preferred_element_type=f32)
         + b2_ref[...] + x.astype(f32))
    mean = jnp.mean(y, axis=-1, keepdims=True)
    var = jnp.mean((y - mean) ** 2, axis=-1, keepdims=True)
    o_ref[...] = ((y - mean) * jax.lax.rsqrt(var + 1e-12) * g_ref[...]
                  + b_ref[...]).astype(o_ref.dtype)


def _linear_kernel(x_ref, w_ref, b_ref, o_ref):
    """y = x @ W + b on a (TM, TN) output tile (vocab projection)."""
    o_ref[...] = (jnp.dot(x_ref[...], w_ref[...],
                          preferred_element_type=jnp.float32) + b_ref[...])


# ----------------------------------------------------------------------------
# Pallas wrappers
# ----------------------------------------------------------------------------
def fused_mha_layernorm(x_q, x_kv, q_valid, k_valid, p, norm_p, n_head, causal):
    """x_q: (B, Lq, D) bf16, x_kv: (B, Lk, D) bf16, *_valid: (B, L) f32 {0,1}."""
    B, Lq, D = x_q.shape
    Lk = x_kv.shape[1]
    assert D % n_head == 0
    scale = 1.0 / math.sqrt(D // n_head)
    TQ = _pick_q_tile(Lq, Lk, D, _budget())
    kernel = functools.partial(_mha_ln_kernel, n_head=n_head, scale=scale,
                               causal=causal)
    qv = q_valid[:, :, None]                                         # (B, Lq, 1)
    kv = k_valid[:, None, :]                                         # (B, 1, Lk)

    return pl.pallas_call(
        kernel,
        out_shape=jax.ShapeDtypeStruct((B, Lq, D), jnp.bfloat16),
        grid=(B, Lq // TQ),
        in_specs=[
            pl.BlockSpec((None, TQ, D), lambda b, q: (b, q, 0)),     # x_q tile
            pl.BlockSpec((None, Lk, D), lambda b, q: (b, 0, 0)),     # x_kv (full)
            pl.BlockSpec((None, TQ, 1), lambda b, q: (b, q, 0)),     # q_valid
            pl.BlockSpec((None, 1, Lk), lambda b, q: (b, 0, 0)),     # k_valid
            _const_spec((D, D)), _const_spec((1, D)),                # w_q, b_q
            _const_spec((D, 2 * D)), _const_spec((1, 2 * D)),        # w_kv, b_kv
            _const_spec((D, D)), _const_spec((1, D)),                # w_o, b_o
            _const_spec((1, D)), _const_spec((1, D)),                # gamma, beta
        ],
        out_specs=pl.BlockSpec((None, TQ, D), lambda b, q: (b, q, 0)),
        scratch_shapes=[
            pltpu.VMEM((TQ, D), jnp.bfloat16),                       # Q tile
            pltpu.VMEM((Lk, D), jnp.bfloat16),                       # K (resident)
            pltpu.VMEM((Lk, D), jnp.bfloat16),                       # V (resident)
            pltpu.VMEM((TQ, D), jnp.bfloat16),                       # ctx (all heads)
        ],
        compiler_params=pltpu.CompilerParams(
            # qi axis carries the K/V scratch -> "arbitrary"; B is parallel.
            dimension_semantics=("parallel", "arbitrary"),
            vmem_limit_bytes=_vmem_limit_bytes()),
    )(x_q, x_kv, qv, kv,
      p["w_q"], p["b_q"], p["w_kv"], p["b_kv"], p["w_o"], p["b_o"],
      norm_p["gamma"], norm_p["beta"])


def fused_ffn_layernorm(x, p, norm_p):
    B, L, D = x.shape
    M = B * L
    H = p["w1"].shape[1]
    TM = _pick_ffn_tile(M, D, H, _budget())
    out = pl.pallas_call(
        _ffn_ln_kernel,
        out_shape=jax.ShapeDtypeStruct((M, D), jnp.bfloat16),
        grid=(M // TM,),
        in_specs=[
            pl.BlockSpec((TM, D), lambda i: (i, 0)),
            _const_spec((D, H)), _const_spec((1, H)),
            _const_spec((H, D)), _const_spec((1, D)),
            _const_spec((1, D)), _const_spec((1, D)),
        ],
        out_specs=pl.BlockSpec((TM, D), lambda i: (i, 0)),
        compiler_params=pltpu.CompilerParams(
            dimension_semantics=("parallel",),
            vmem_limit_bytes=_vmem_limit_bytes()),
    )(x.reshape(M, D), p["w1"], p["b1"], p["w2"], p["b2"],
      norm_p["gamma"], norm_p["beta"])
    return out.reshape(B, L, D)


def linear_out(x2, w, b):
    """Tiled (M, N) vocab projection.  Grid is (N-tile, M-tile) so the big
    (D, TN) weight block is the resident operand over the inner row axis and is
    read from HBM only once per column tile."""
    M, D = x2.shape
    N = w.shape[1]
    TM = _row_tile(M)
    TN = _pick_col_tile(N, TM, D, _budget())
    return pl.pallas_call(
        _linear_kernel,
        out_shape=jax.ShapeDtypeStruct((M, N), jnp.float32),
        grid=(N // TN, M // TM),
        in_specs=[
            pl.BlockSpec((TM, D), lambda j, i: (i, 0)),              # x streamed
            pl.BlockSpec((D, TN), lambda j, i: (0, j)),              # W resident
            pl.BlockSpec((1, TN), lambda j, i: (0, j)),
        ],
        out_specs=pl.BlockSpec((TM, TN), lambda j, i: (i, j)),
        compiler_params=pltpu.CompilerParams(
            dimension_semantics=("parallel", "parallel"),
            vmem_limit_bytes=_vmem_limit_bytes()),
    )(x2, w, b)


# ----------------------------------------------------------------------------
# Model glue (plain JAX; hot paths are the fused Pallas kernels above)
# ----------------------------------------------------------------------------
def transformer_embedding(ids, emb_p):
    # token embedding + sinusoidal positional encoding (dropout == identity);
    # activations handed to the kernels in bf16.
    L = ids.shape[1]
    tok = emb_p["table"][ids]                                        # (B, L, D) f32
    return (tok + emb_p["pos"][:L][None, :, :]).astype(jnp.bfloat16)


def encoder_layer(x, src_valid, lp, n_head):
    x = fused_mha_layernorm(x, x, src_valid, src_valid,
                            lp["attn"], lp["norm1"], n_head, causal=False)
    x = fused_ffn_layernorm(x, lp["ffn"], lp["norm2"])
    return x


def decoder_layer(dec, enc, trg_valid, src_valid, lp, n_head):
    x = fused_mha_layernorm(dec, dec, trg_valid, trg_valid,
                            lp["self_attn"], lp["norm1"], n_head, causal=True)
    x = fused_mha_layernorm(x, enc, trg_valid, src_valid,
                            lp["enc_dec_attn"], lp["norm2"], n_head, causal=False)
    x = fused_ffn_layernorm(x, lp["ffn"], lp["norm3"])
    return x


def transformer_forward(params, src, trg, src_pad_idx, n_head):
    # Reference make_pad_mask uses src_pad_idx for both q and k validity.
    src_valid = (src != src_pad_idx).astype(jnp.float32)             # (B, Ls)
    trg_valid = (trg != src_pad_idx).astype(jnp.float32)             # (B, Lt)

    x = transformer_embedding(src, params["encoder"]["emb"])
    for lp in params["encoder"]["layers"]:
        x = encoder_layer(x, src_valid, lp, n_head)
    enc_src = x

    y = transformer_embedding(trg, params["decoder"]["emb"])
    for lp in params["decoder"]["layers"]:
        y = decoder_layer(y, enc_src, trg_valid, src_valid, lp, n_head)

    B, L, D = y.shape
    V = params["decoder"]["out_w"].shape[1]
    out = linear_out(y.reshape(B * L, D),
                     params["decoder"]["out_w"],
                     params["decoder"]["out_b"]).reshape(B, L, V)
    return out


# ----------------------------------------------------------------------------
# Deterministic parameter initialization (weights stored bf16, biases/LN f32)
# ----------------------------------------------------------------------------
def _dense_init(key, fan_in, fan_out):
    kw, kb = jax.random.split(key)
    bound = 1.0 / math.sqrt(fan_in)
    w = jax.random.uniform(kw, (fan_in, fan_out), jnp.float32, -bound, bound)
    b = jax.random.uniform(kb, (fan_out,), jnp.float32, -bound, bound)
    return w.astype(jnp.bfloat16), b.reshape(1, fan_out)


def _init_attention(key, d_model):
    kq, kk, kv, ko = jax.random.split(key, 4)
    w_q, b_q = _dense_init(kq, d_model, d_model)
    w_k, b_k = _dense_init(kk, d_model, d_model)
    w_v, b_v = _dense_init(kv, d_model, d_model)
    w_o, b_o = _dense_init(ko, d_model, d_model)
    return {
        "w_q": w_q, "b_q": b_q,
        # K and V projections fused column-wise into one (D, 2D) weight.
        "w_kv": jnp.concatenate([w_k, w_v], axis=1),
        "b_kv": jnp.concatenate([b_k, b_v], axis=1),
        "w_o": w_o, "b_o": b_o,
    }


def _init_layernorm(d_model):
    return {"gamma": jnp.ones((1, d_model), jnp.float32),
            "beta": jnp.zeros((1, d_model), jnp.float32)}


def _init_ffn(key, d_model, hidden):
    k1, k2 = jax.random.split(key)
    w1, b1 = _dense_init(k1, d_model, hidden)
    w2, b2 = _dense_init(k2, hidden, d_model)
    return {"w1": w1, "b1": b1, "w2": w2, "b2": b2}


def _init_encoder_layer(key, d_model, ffn_hidden):
    k1, k2 = jax.random.split(key)
    return {"attn": _init_attention(k1, d_model),
            "norm1": _init_layernorm(d_model),
            "ffn": _init_ffn(k2, d_model, ffn_hidden),
            "norm2": _init_layernorm(d_model)}


def _init_decoder_layer(key, d_model, ffn_hidden):
    k1, k2, k3 = jax.random.split(key, 3)
    return {"self_attn": _init_attention(k1, d_model),
            "norm1": _init_layernorm(d_model),
            "enc_dec_attn": _init_attention(k2, d_model),
            "norm2": _init_layernorm(d_model),
            "ffn": _init_ffn(k3, d_model, ffn_hidden),
            "norm3": _init_layernorm(d_model)}


def _positional_encoding(max_len, d_model):
    pos = jnp.arange(max_len, dtype=jnp.float32)[:, None]
    i2 = jnp.arange(0, d_model, 2, dtype=jnp.float32)
    angle = pos / jnp.power(10000.0, i2 / d_model)
    pe = jnp.zeros((max_len, d_model), jnp.float32)
    pe = pe.at[:, 0::2].set(jnp.sin(angle))
    pe = pe.at[:, 1::2].set(jnp.cos(angle))
    return pe


def _init_embedding(key, vocab_size, d_model, max_len, pad_idx=1):
    table = jax.random.normal(key, (vocab_size, d_model), jnp.float32)
    table = table.at[pad_idx].set(0.0)  # nn.Embedding(padding_idx=1)
    return {"table": table, "pos": _positional_encoding(max_len, d_model)}


def init_transformer(key, enc_voc, dec_voc, max_len, d_model, ffn_hidden,
                     n_layers):
    k_enc_emb, k_dec_emb, k_out, k_rest = jax.random.split(key, 4)
    enc_keys = jax.random.split(jax.random.fold_in(k_rest, 0), n_layers)
    dec_keys = jax.random.split(jax.random.fold_in(k_rest, 1), n_layers)
    out_w, out_b = _dense_init(k_out, d_model, dec_voc)
    return {
        "encoder": {
            "emb": _init_embedding(k_enc_emb, enc_voc, d_model, max_len),
            "layers": [_init_encoder_layer(k, d_model, ffn_hidden)
                       for k in enc_keys],
        },
        "decoder": {
            "emb": _init_embedding(k_dec_emb, dec_voc, d_model, max_len),
            "layers": [_init_decoder_layer(k, d_model, ffn_hidden)
                       for k in dec_keys],
            "out_w": out_w,
            "out_b": out_b,
        },
    }


# ----------------------------------------------------------------------------
if __name__ == "__main__":
    B = 2
    L_SRC = 16
    L_TRG = 8
    D_MODEL = 32
    N_HEAD = 4
    FFN_HIDDEN = 64
    N_LAYERS = 2
    MAX_LEN = 16
    ENC_VOC = 64
    DEC_VOC = 64
    SRC_PAD_IDX = 1  # (trg_pad_idx / trg_sos_idx don't affect this forward)

    key = jax.random.PRNGKey(0)
    k_params, k_src, k_trg = jax.random.split(key, 3)

    params = init_transformer(
        k_params, ENC_VOC, DEC_VOC, MAX_LEN, D_MODEL, FFN_HIDDEN, N_LAYERS
    )
    src = jax.random.randint(k_src, (B, L_SRC), 0, ENC_VOC, dtype=jnp.int32)
    trg = jax.random.randint(k_trg, (B, L_TRG), 0, DEC_VOC, dtype=jnp.int32)

    out = transformer_forward(params, src, trg, SRC_PAD_IDX, N_HEAD)
    out = jax.block_until_ready(out)

    assert out.shape == (B, L_TRG, DEC_VOC), out.shape
    assert bool(jnp.all(jnp.isfinite(out)))
    print("KERNEL_OK")
</pallas_src>

<mosaic_0001>
module attributes {stable_mosaic.version = 11 : i64} {
  func.func @k(%arg0: i32, %arg1: memref<8x128xf32, #tpu.memory_space<vmem>>, %arg2: memref<8x128xf32, #tpu.memory_space<vmem>>) attributes {dimension_semantics = [#tpu.dimension_semantics<arbitrary>], iteration_bounds = array<i64: 2>, scalar_prefetch = 0 : i64, scratch_operands = 0 : i64, tpu.core_type = #tpu.core_type<tc>, window_params = [{pipeline_mode = #tpu.pipeline_mode<synchronous>, transform_indices = @transform_0, window_bounds = array<i64: 8, 128>}, {transform_indices = @transform_1, window_bounds = array<i64: 8, 128>}]} {
    %c0 = arith.constant 0 : index
    %c0_0 = arith.constant 0 : index
    %0 = vector.load %arg1[%c0, %c0_0] : memref<8x128xf32, #tpu.memory_space<vmem>>, vector<8x128xf32>
    %cst = arith.constant 2.000000e+00 : f32
    %1 = vector.broadcast %cst : f32 to vector<8x128xf32>
    %2 = arith.mulf %0, %1 : vector<8x128xf32>
    %c0_1 = arith.constant 0 : index
    %c0_2 = arith.constant 0 : index
    %3 = vector.load %arg2[%c0_1, %c0_2] : memref<8x128xf32, #tpu.memory_space<vmem>>, vector<8x128xf32>
    tpu.vector_store %arg2[%c0_1, %c0_2], %2 {strides = array<i32>} : memref<8x128xf32, #tpu.memory_space<vmem>>, vector<8x128xf32>,
    return
  }
  func.func @transform_0(%arg0: i32) -> (i32, i32) {
    %c0_i32 = arith.constant 0 : i32
    %c0_i32_0 = arith.constant 0 : i32
    %c0_i32_1 = arith.constant 0 : i32
    return %c0_i32, %c0_i32_0 : i32, i32
  }
  func.func @transform_1(%arg0: i32) -> (i32, i32) {
    %c0_i32 = arith.constant 0 : i32
    %c0_i32_0 = arith.constant 0 : i32
    return %arg0, %c0_i32 : i32, i32
  }
}

module attributes {stable_mosaic.version = 11 : i64} {
  func.func @_mha_ln_kernel(%arg0: i32, %arg1: i32, %arg2: memref<1x16x32xbf16, #tpu.memory_space<vmem>>, %arg3: memref<1x16x32xbf16, #tpu.memory_space<vmem>>, %arg4: memref<1x16x1xf32, #tpu.memory_space<vmem>>, %arg5: memref<1x1x16xf32, #tpu.memory_space<vmem>>, %arg6: memref<32x32xbf16, #tpu.memory_space<vmem>>, %arg7: memref<1x32xf32, #tpu.memory_space<vmem>>, %arg8: memref<32x64xbf16, #tpu.memory_space<vmem>>, %arg9: memref<1x64xf32, #tpu.memory_space<vmem>>, %arg10: memref<32x32xbf16, #tpu.memory_space<vmem>>, %arg11: memref<1x32xf32, #tpu.memory_space<vmem>>, %arg12: memref<1x32xf32, #tpu.memory_space<vmem>>, %arg13: memref<1x32xf32, #tpu.memory_space<vmem>>, %arg14: memref<1x16x32xbf16, #tpu.memory_space<vmem>>, %arg15: memref<16x32xbf16, #tpu.memory_space<vmem>>, %arg16: memref<16x32xbf16, #tpu.memory_space<vmem>>, %arg17: memref<16x32xbf16, #tpu.memory_space<vmem>>, %arg18: memref<16x32xbf16, #tpu.memory_space<vmem>>) attributes {dimension_semantics = [#tpu.dimension_semantics<parallel>, #tpu.dimension_semantics<arbitrary>], iteration_bounds = array<i64: 2, 1>, scalar_prefetch = 0 : i64, scratch_operands = 4 : i64, tpu.core_type = #tpu.core_type<tc>, window_params = [{transform_indices = @transform_0, window_bounds = array<i64: 1, 16, 32>}, {transform_indices = @transform_1, window_bounds = array<i64: 1, 16, 32>}, {transform_indices = @transform_2, window_bounds = array<i64: 1, 16, 1>}, {transform_indices = @transform_3, window_bounds = array<i64: 1, 1, 16>}, {pipeline_mode = #tpu.pipeline_mode<synchronous>, transform_indices = @transform_4, window_bounds = array<i64: 32, 32>}, {pipeline_mode = #tpu.pipeline_mode<synchronous>, transform_indices = @transform_5, window_bounds = array<i64: 1, 32>}, {pipeline_mode = #tpu.pipeline_mode<synchronous>, transform_indices = @transform_6, window_bounds = array<i64: 32, 64>}, {pipeline_mode = #tpu.pipeline_mode<synchronous>, transform_indices = @transform_7, window_bounds = array<i64: 1, 64>}, {pipeline_mode = #tpu.pipeline_mode<synchronous>, transform_indices = @transform_8, window_bounds = array<i64: 32, 32>}, {pipeline_mode = #tpu.pipeline_mode<synchronous>, transform_indices = @transform_9, window_bounds = array<i64: 1, 32>}, {pipeline_mode = #tpu.pipeline_mode<synchronous>, transform_indices = @transform_10, window_bounds = array<i64: 1, 32>}, {pipeline_mode = #tpu.pipeline_mode<synchronous>, transform_indices = @transform_11, window_bounds = array<i64: 1, 32>}, {transform_indices = @transform_12, window_bounds = array<i64: 1, 16, 32>}]} {
    %c0_i32 = arith.constant 0 : i32
    %0 = arith.cmpi eq, %arg1, %c0_i32 : i32
    %1 = arith.extui %0 : i1 to i32
    %c0_i32_0 = arith.constant 0 : i32
    %2 = arith.cmpi ne, %1, %c0_i32_0 : i32
    scf.if %2 {
      %c0_92 = arith.constant 0 : index
      %c0_93 = arith.constant 0 : index
      %c0_94 = arith.constant 0 : index
      %149 = vector.load %arg3[%c0_92, %c0_93, %c0_94] : memref<1x16x32xbf16, #tpu.memory_space<vmem>>, vector<1x16x32xbf16>
      %150 = vector.shape_cast %149 : vector<1x16x32xbf16> to vector<16x32xbf16>
      %c0_95 = arith.constant 0 : index
      %c0_96 = arith.constant 0 : index
      %151 = vector.load %arg8[%c0_95, %c0_96] : memref<32x64xbf16, #tpu.memory_space<vmem>>, vector<32x64xbf16>
      %cst_97 = arith.constant dense<0.000000e+00> : vector<16x64xf32>
      %152 = tpu.matmul %150, %151, %cst_97 {dimension_numbers = #tpu.dot_dimension_numbers<[1], [0], [0], [1], [0, 0, 1, 1], [], []>} : vector<16x32xbf16>, vector<32x64xbf16>, vector<16x64xf32> -> vector<16x64xf32>
      %c0_98 = arith.constant 0 : index
      %c0_99 = arith.constant 0 : index
      %153 = vector.load %arg9[%c0_98, %c0_99] : memref<1x64xf32, #tpu.memory_space<vmem>>, vector<1x64xf32>
      %154 = vector.broadcast %153 : vector<1x64xf32> to vector<16x64xf32>
      %155 = arith.addf %152, %154 : vector<16x64xf32>
      %156 = vector.extract_strided_slice %155 {offsets = [0, 0], sizes = [16, 32], strides = [1, 1]} : vector<16x64xf32> to vector<16x32xf32>
      %157 = arith.truncf %156 : vector<16x32xf32> to vector<16x32xbf16>
      %c0_100 = arith.constant 0 : index
      %c0_101 = arith.constant 0 : index
      %158 = vector.load %arg16[%c0_100, %c0_101] : memref<16x32xbf16, #tpu.memory_space<vmem>>, vector<16x32xbf16>
      tpu.vector_store %arg16[%c0_100, %c0_101], %157 {strides = array<i32>} : memref<16x32xbf16, #tpu.memory_space<vmem>>, vector<16x32xbf16>,
      %159 = vector.extract_strided_slice %155 {offsets = [0, 32], sizes = [16, 32], strides = [1, 1]} : vector<16x64xf32> to vector<16x32xf32>
      %160 = arith.truncf %159 : vector<16x32xf32> to vector<16x32xbf16>
      %c0_102 = arith.constant 0 : index
      %c0_103 = arith.constant 0 : index
      %161 = vector.load %arg17[%c0_102, %c0_103] : memref<16x32xbf16, #tpu.memory_space<vmem>>, vector<16x32xbf16>
      tpu.vector_store %arg17[%c0_102, %c0_103], %160 {strides = array<i32>} : memref<16x32xbf16, #tpu.memory_space<vmem>>, vector<16x32xbf16>,
    } else {
    }
    %c0 = arith.constant 0 : index
    %c0_1 = arith.constant 0 : index
    %c0_2 = arith.constant 0 : index
    %3 = vector.load %arg2[%c0, %c0_1, %c0_2] : memref<1x16x32xbf16, #tpu.memory_space<vmem>>, vector<1x16x32xbf16>
    %4 = vector.shape_cast %3 : vector<1x16x32xbf16> to vector<16x32xbf16>
    %c0_3 = arith.constant 0 : index
    %c0_4 = arith.constant 0 : index
    %5 = vector.load %arg6[%c0_3, %c0_4] : memref<32x32xbf16, #tpu.memory_space<vmem>>, vector<32x32xbf16>
    %cst = arith.constant dense<0.000000e+00> : vector<16x32xf32>
    %6 = tpu.matmul %4, %5, %cst {dimension_numbers = #tpu.dot_dimension_numbers<[1], [0], [0], [1], [0, 0, 1, 1], [], []>} : vector<16x32xbf16>, vector<32x32xbf16>, vector<16x32xf32> -> vector<16x32xf32>
    %c0_5 = arith.constant 0 : index
    %c0_6 = arith.constant 0 : index
    %7 = vector.load %arg7[%c0_5, %c0_6] : memref<1x32xf32, #tpu.memory_space<vmem>>, vector<1x32xf32>
    %8 = vector.broadcast %7 : vector<1x32xf32> to vector<16x32xf32>
    %9 = arith.addf %6, %8 : vector<16x32xf32>
    %10 = arith.truncf %9 : vector<16x32xf32> to vector<16x32xbf16>
    %c0_7 = arith.constant 0 : index
    %c0_8 = arith.constant 0 : index
    %11 = vector.load %arg15[%c0_7, %c0_8] : memref<16x32xbf16, #tpu.memory_space<vmem>>, vector<16x32xbf16>
    tpu.vector_store %arg15[%c0_7, %c0_8], %10 {strides = array<i32>} : memref<16x32xbf16, #tpu.memory_space<vmem>>, vector<16x32xbf16>,
    %c0_9 = arith.constant 0 : index
    %c0_10 = arith.constant 0 : index
    %c0_11 = arith.constant 0 : index
    %12 = vector.load %arg4[%c0_9, %c0_10, %c0_11] : memref<1x16x1xf32, #tpu.memory_space<vmem>>, vector<1x16x1xf32>
    %13 = vector.shape_cast %12 : vector<1x16x1xf32> to vector<16x1xf32>
    %cst_12 = arith.constant 5.000000e-01 : f32
    %14 = vector.broadcast %cst_12 : f32 to vector<16x1xf32>
    %15 = arith.cmpf ogt, %13, %14 : vector<16x1xf32>
    %c0_13 = arith.constant 0 : index
    %c0_14 = arith.constant 0 : index
    %c0_15 = arith.constant 0 : index
    %16 = vector.load %arg5[%c0_13, %c0_14, %c0_15] : memref<1x1x16xf32, #tpu.memory_space<vmem>>, vector<1x1x16xf32>
    %17 = vector.shape_cast %16 : vector<1x1x16xf32> to vector<1x16xf32>
    %cst_16 = arith.constant 5.000000e-01 : f32
    %18 = vector.broadcast %cst_16 : f32 to vector<1x16xf32>
    %19 = arith.cmpf ogt, %17, %18 : vector<1x16xf32>
    %20 = vector.broadcast %15 : vector<16x1xi1> to vector<16x16xi1>
    %21 = vector.broadcast %19 : vector<1x16xi1> to vector<16x16xi1>
    %22 = arith.andi %20, %21 : vector<16x16xi1>
    %c0_17 = arith.constant 0 : index
    %c0_18 = arith.constant 0 : index
    %23 = vector.load %arg15[%c0_17, %c0_18] : memref<16x32xbf16, #tpu.memory_space<vmem>>, vector<16x8xbf16>
    %c0_19 = arith.constant 0 : index
    %c0_20 = arith.constant 0 : index
    %24 = vector.load %arg16[%c0_19, %c0_20] : memref<16x32xbf16, #tpu.memory_space<vmem>>, vector<16x8xbf16>
    %cst_21 = arith.constant dense<0.000000e+00> : vector<16x16xf32>
    %25 = tpu.matmul %23, %24, %cst_21 {dimension_numbers = #tpu.dot_dimension_numbers<[1], [1], [0], [0], [0, 0, 1, 0], [], []>} : vector<16x8xbf16>, vector<16x8xbf16>, vector<16x16xf32> -> vector<16x16xf32>
    %cst_22 = arith.constant 0.353553385 : f32
    %26 = vector.broadcast %cst_22 : f32 to vector<16x16xf32>
    %27 = arith.mulf %25, %26 : vector<16x16xf32>
    %cst_23 = arith.constant -1.000000e+04 : f32
    %28 = vector.broadcast %cst_23 : f32 to vector<16x16xf32>
    %29 = arith.select %22, %27, %28 : vector<16x16xi1>, vector<16x16xf32>
    %cst_24 = arith.constant dense<0xFF800000> : vector<16xf32>
    %30 = vector.multi_reduction <maximumf>, %29, %cst_24 [1] : vector<16x16xf32> to vector<16xf32>
    %31 = vector.shape_cast %30 : vector<16xf32> to vector<16x1xf32>
    %32 = vector.broadcast %31 : vector<16x1xf32> to vector<16x16xf32>
    %33 = arith.subf %29, %32 : vector<16x16xf32>
    %34 = math.exp %33 : vector<16x16xf32>
    %cst_25 = arith.constant dense<0.000000e+00> : vector<16xf32>
    %35 = vector.multi_reduction <add>, %34, %cst_25 [1] : vector<16x16xf32> to vector<16xf32>
    %36 = vector.shape_cast %35 : vector<16xf32> to vector<16x1xf32>
    %37 = tpu.reciprocal %36 {approx = true} : vector<16x1xf32> -> vector<16x1xf32>
    %38 = vector.broadcast %37 : vector<16x1xf32> to vector<16x16xf32>
    %39 = arith.mulf %34, %38 : vector<16x16xf32>
    %40 = arith.truncf %39 : vector<16x16xf32> to vector<16x16xbf16>
    %c0_26 = arith.constant 0 : index
    %c0_27 = arith.constant 0 : index
    %41 = vector.load %arg17[%c0_26, %c0_27] : memref<16x32xbf16, #tpu.memory_space<vmem>>, vector<16x8xbf16>
    %cst_28 = arith.constant dense<0.000000e+00> : vector<16x8xf32>
    %42 = tpu.matmul %40, %41, %cst_28 {dimension_numbers = #tpu.dot_dimension_numbers<[1], [0], [0], [1], [0, 0, 1, 1], [], []>} : vector<16x16xbf16>, vector<16x8xbf16>, vector<16x8xf32> -> vector<16x8xf32>
    %43 = arith.truncf %42 : vector<16x8xf32> to vector<16x8xbf16>
    %c0_29 = arith.constant 0 : index
    %c0_30 = arith.constant 0 : index
    %44 = vector.load %arg18[%c0_29, %c0_30] : memref<16x32xbf16, #tpu.memory_space<vmem>>, vector<16x8xbf16>
    tpu.vector_store %arg18[%c0_29, %c0_30], %43 {strides = array<i32>} : memref<16x32xbf16, #tpu.memory_space<vmem>>, vector<16x8xbf16>,
    %c0_31 = arith.constant 0 : index
    %c8 = arith.constant 8 : index
    %45 = vector.load %arg15[%c0_31, %c8] : memref<16x32xbf16, #tpu.memory_space<vmem>>, vector<16x8xbf16>
    %c0_32 = arith.constant 0 : index
    %c8_33 = arith.constant 8 : index
    %46 = vector.load %arg16[%c0_32, %c8_33] : memref<16x32xbf16, #tpu.memory_space<vmem>>, vector<16x8xbf16>
    %cst_34 = arith.constant dense<0.000000e+00> : vector<16x16xf32>
    %47 = tpu.matmul %45, %46, %cst_34 {dimension_numbers = #tpu.dot_dimension_numbers<[1], [1], [0], [0], [0, 0, 1, 0], [], []>} : vector<16x8xbf16>, vector<16x8xbf16>, vector<16x16xf32> -> vector<16x16xf32>
    %cst_35 = arith.constant 0.353553385 : f32
    %48 = vector.broadcast %cst_35 : f32 to vector<16x16xf32>
    %49 = arith.mulf %47, %48 : vector<16x16xf32>
    %cst_36 = arith.constant -1.000000e+04 : f32
    %50 = vector.broadcast %cst_36 : f32 to vector<16x16xf32>
    %51 = arith.select %22, %49, %50 : vector<16x16xi1>, vector<16x16xf32>
    %cst_37 = arith.constant dense<0xFF800000> : vector<16xf32>
    %52 = vector.multi_reduction <maximumf>, %51, %cst_37 [1] : vector<16x16xf32> to vector<16xf32>
    %53 = vector.shape_cast %52 : vector<16xf32> to vector<16x1xf32>
    %54 = vector.broadcast %53 : vector<16x1xf32> to vector<16x16xf32>
    %55 = arith.subf %51, %54 : vector<16x16xf32>
    %56 = math.exp %55 : vector<16x16xf32>
    %cst_38 = arith.constant dense<0.000000e+00> : vector<16xf32>
    %57 = vector.multi_reduction <add>, %56, %cst_38 [1] : vector<16x16xf32> to vector<16xf32>
    %58 = vector.shape_cast %57 : vector<16xf32> to vector<16x1xf32>
    %59 = tpu.reciprocal %58 {approx = true} : vector<16x1xf32> -> vector<16x1xf32>
    %60 = vector.broadcast %59 : vector<16x1xf32> to vector<16x16xf32>
    %61 = arith.mulf %56, %60 : vector<16x16xf32>
    %62 = arith.truncf %61 : vector<16x16xf32> to vector<16x16xbf16>
    %c0_39 = arith.constant 0 : index
    %c8_40 = arith.constant 8 : index
    %63 = vector.load %arg17[%c0_39, %c8_40] : memref<16x32xbf16, #tpu.memory_space<vmem>>, vector<16x8xbf16>
    %cst_41 = arith.constant dense<0.000000e+00> : vector<16x8xf32>
    %64 = tpu.matmul %62, %63, %cst_41 {dimension_numbers = #tpu.dot_dimension_numbers<[1], [0], [0], [1], [0, 0, 1, 1], [], []>} : vector<16x16xbf16>, vector<16x8xbf16>, vector<16x8xf32> -> vector<16x8xf32>
    %65 = arith.truncf %64 : vector<16x8xf32> to vector<16x8xbf16>
    %c0_42 = arith.constant 0 : index
    %c8_43 = arith.constant 8 : index
    %66 = vector.load %arg18[%c0_42, %c8_43] : memref<16x32xbf16, #tpu.memory_space<vmem>>, vector<16x8xbf16>
    tpu.vector_store %arg18[%c0_42, %c8_43], %65 {strides = array<i32>} : memref<16x32xbf16, #tpu.memory_space<vmem>>, vector<16x8xbf16>,
    %c0_44 = arith.constant 0 : index
    %c16 = arith.constant 16 : index
    %67 = vector.load %arg15[%c0_44, %c16] : memref<16x32xbf16, #tpu.memory_space<vmem>>, vector<16x8xbf16>
    %c0_45 = arith.constant 0 : index
    %c16_46 = arith.constant 16 : index
    %68 = vector.load %arg16[%c0_45, %c16_46] : memref<16x32xbf16, #tpu.memory_space<vmem>>, vector<16x8xbf16>
    %cst_47 = arith.constant dense<0.000000e+00> : vector<16x16xf32>
    %69 = tpu.matmul %67, %68, %cst_47 {dimension_numbers = #tpu.dot_dimension_numbers<[1], [1], [0], [0], [0, 0, 1, 0], [], []>} : vector<16x8xbf16>, vector<16x8xbf16>, vector<16x16xf32> -> vector<16x16xf32>
    %cst_48 = arith.constant 0.353553385 : f32
    %70 = vector.broadcast %cst_48 : f32 to vector<16x16xf32>
    %71 = arith.mulf %69, %70 : vector<16x16xf32>
    %cst_49 = arith.constant -1.000000e+04 : f32
    %72 = vector.broadcast %cst_49 : f32 to vector<16x16xf32>
    %73 = arith.select %22, %71, %72 : vector<16x16xi1>, vector<16x16xf32>
    %cst_50 = arith.constant dense<0xFF800000> : vector<16xf32>
    %74 = vector.multi_reduction <maximumf>, %73, %cst_50 [1] : vector<16x16xf32> to vector<16xf32>
    %75 = vector.shape_cast %74 : vector<16xf32> to vector<16x1xf32>
    %76 = vector.broadcast %75 : vector<16x1xf32> to vector<16x16xf32>
    %77 = arith.subf %73, %76 : vector<16x16xf32>
    %78 = math.exp %77 : vector<16x16xf32>
    %cst_51 = arith.constant dense<0.000000e+00> : vector<16xf32>
    %79 = vector.multi_reduction <add>, %78, %cst_51 [1] : vector<16x16xf32> to vector<16xf32>
    %80 = vector.shape_cast %79 : vector<16xf32> to vector<16x1xf32>
    %81 = tpu.reciprocal %80 {approx = true} : vector<16x1xf32> -> vector<16x1xf32>
    %82 = vector.broadcast %81 : vector<16x1xf32> to vector<16x16xf32>
    %83 = arith.mulf %78, %82 : vector<16x16xf32>
    %84 = arith.truncf %83 : vector<16x16xf32> to vector<16x16xbf16>
    %c0_52 = arith.constant 0 : index
    %c16_53 = arith.constant 16 : index
    %85 = vector.load %arg17[%c0_52, %c16_53] : memref<16x32xbf16, #tpu.memory_space<vmem>>, vector<16x8xbf16>
    %cst_54 = arith.constant dense<0.000000e+00> : vector<16x8xf32>
    %86 = tpu.matmul %84, %85, %cst_54 {dimension_numbers = #tpu.dot_dimension_numbers<[1], [0], [0], [1], [0, 0, 1, 1], [], []>} : vector<16x16xbf16>, vector<16x8xbf16>, vector<16x8xf32> -> vector<16x8xf32>
    %87 = arith.truncf %86 : vector<16x8xf32> to vector<16x8xbf16>
    %c0_55 = arith.constant 0 : index
    %c16_56 = arith.constant 16 : index
    %88 = vector.load %arg18[%c0_55, %c16_56] : memref<16x32xbf16, #tpu.memory_space<vmem>>, vector<16x8xbf16>
    tpu.vector_store %arg18[%c0_55, %c16_56], %87 {strides = array<i32>} : memref<16x32xbf16, #tpu.memory_space<vmem>>, vector<16x8xbf16>,
    %c0_57 = arith.constant 0 : index
    %c24 = arith.constant 24 : index
    %89 = vector.load %arg15[%c0_57, %c24] : memref<16x32xbf16, #tpu.memory_space<vmem>>, vector<16x8xbf16>
    %c0_58 = arith.constant 0 : index
    %c24_59 = arith.constant 24 : index
    %90 = vector.load %arg16[%c0_58, %c24_59] : memref<16x32xbf16, #tpu.memory_space<vmem>>, vector<16x8xbf16>
    %cst_60 = arith.constant dense<0.000000e+00> : vector<16x16xf32>
    %91 = tpu.matmul %89, %90, %cst_60 {dimension_numbers = #tpu.dot_dimension_numbers<[1], [1], [0], [0], [0, 0, 1, 0], [], []>} : vector<16x8xbf16>, vector<16x8xbf16>, vector<16x16xf32> -> vector<16x16xf32>
    %cst_61 = arith.constant 0.353553385 : f32
    %92 = vector.broadcast %cst_61 : f32 to vector<16x16xf32>
    %93 = arith.mulf %91, %92 : vector<16x16xf32>
    %cst_62 = arith.constant -1.000000e+04 : f32
    %94 = vector.broadcast %cst_62 : f32 to vector<16x16xf32>
    %95 = arith.select %22, %93, %94 : vector<16x16xi1>, vector<16x16xf32>
    %cst_63 = arith.constant dense<0xFF800000> : vector<16xf32>
    %96 = vector.multi_reduction <maximumf>, %95, %cst_63 [1] : vector<16x16xf32> to vector<16xf32>
    %97 = vector.shape_cast %96 : vector<16xf32> to vector<16x1xf32>
    %98 = vector.broadcast %97 : vector<16x1xf32> to vector<16x16xf32>
    %99 = arith.subf %95, %98 : vector<16x16xf32>
    %100 = math.exp %99 : vector<16x16xf32>
    %cst_64 = arith.constant dense<0.000000e+00> : vector<16xf32>
    %101 = vector.multi_reduction <add>, %100, %cst_64 [1] : vector<16x16xf32> to vector<16xf32>
    %102 = vector.shape_cast %101 : vector<16xf32> to vector<16x1xf32>
    %103 = tpu.reciprocal %102 {approx = true} : vector<16x1xf32> -> vector<16x1xf32>
    %104 = vector.broadcast %103 : vector<16x1xf32> to vector<16x16xf32>
    %105 = arith.mulf %100, %104 : vector<16x16xf32>
    %106 = arith.truncf %105 : vector<16x16xf32> to vector<16x16xbf16>
    %c0_65 = arith.constant 0 : index
    %c24_66 = arith.constant 24 : index
    %107 = vector.load %arg17[%c0_65, %c24_66] : memref<16x32xbf16, #tpu.memory_space<vmem>>, vector<16x8xbf16>
    %cst_67 = arith.constant dense<0.000000e+00> : vector<16x8xf32>
    %108 = tpu.matmul %106, %107, %cst_67 {dimension_numbers = #tpu.dot_dimension_numbers<[1], [0], [0], [1], [0, 0, 1, 1], [], []>} : vector<16x16xbf16>, vector<16x8xbf16>, vector<16x8xf32> -> vector<16x8xf32>
    %109 = arith.truncf %108 : vector<16x8xf32> to vector<16x8xbf16>
    %c0_68 = arith.constant 0 : index
    %c24_69 = arith.constant 24 : index
    %110 = vector.load %arg18[%c0_68, %c24_69] : memref<16x32xbf16, #tpu.memory_space<vmem>>, vector<16x8xbf16>
    tpu.vector_store %arg18[%c0_68, %c24_69], %109 {strides = array<i32>} : memref<16x32xbf16, #tpu.memory_space<vmem>>, vector<16x8xbf16>,
    %c0_70 = arith.constant 0 : index
    %c0_71 = arith.constant 0 : index
    %111 = vector.load %arg18[%c0_70, %c0_71] : memref<16x32xbf16, #tpu.memory_space<vmem>>, vector<16x32xbf16>
    %c0_72 = arith.constant 0 : index
    %c0_73 = arith.constant 0 : index
    %112 = vector.load %arg10[%c0_72, %c0_73] : memref<32x32xbf16, #tpu.memory_space<vmem>>, vector<32x32xbf16>
    %cst_74 = arith.constant dense<0.000000e+00> : vector<16x32xf32>
    %113 = tpu.matmul %111, %112, %cst_74 {dimension_numbers = #tpu.dot_dimension_numbers<[1], [0], [0], [1], [0, 0, 1, 1], [], []>} : vector<16x32xbf16>, vector<32x32xbf16>, vector<16x32xf32> -> vector<16x32xf32>
    %c0_75 = arith.constant 0 : index
    %c0_76 = arith.constant 0 : index
    %114 = vector.load %arg11[%c0_75, %c0_76] : memref<1x32xf32, #tpu.memory_space<vmem>>, vector<1x32xf32>
    %115 = vector.broadcast %114 : vector<1x32xf32> to vector<16x32xf32>
    %116 = arith.addf %113, %115 : vector<16x32xf32>
    %c0_77 = arith.constant 0 : index
    %c0_78 = arith.constant 0 : index
    %c0_79 = arith.constant 0 : index
    %117 = vector.load %arg2[%c0_77, %c0_78, %c0_79] : memref<1x16x32xbf16, #tpu.memory_space<vmem>>, vector<1x16x32xbf16>
    %118 = vector.shape_cast %117 : vector<1x16x32xbf16> to vector<16x32xbf16>
    %119 = arith.extf %118 : vector<16x32xbf16> to vector<16x32xf32>
    %120 = arith.addf %116, %119 : vector<16x32xf32>
    %cst_80 = arith.constant dense<0.000000e+00> : vector<16xf32>
    %121 = vector.multi_reduction <add>, %120, %cst_80 [1] : vector<16x32xf32> to vector<16xf32>
    %122 = vector.shape_cast %121 : vector<16xf32> to vector<16x1xf32>
    %cst_81 = arith.constant 3.200000e+01 : f32
    %123 = vector.broadcast %cst_81 : f32 to vector<16x1xf32>
    %124 = arith.divf %122, %123 : vector<16x1xf32>
    %125 = vector.broadcast %124 : vector<16x1xf32> to vector<16x32xf32>
    %126 = arith.subf %120, %125 : vector<16x32xf32>
    %127 = arith.mulf %126, %126 : vector<16x32xf32>
    %cst_82 = arith.constant dense<0.000000e+00> : vector<16xf32>
    %128 = vector.multi_reduction <add>, %127, %cst_82 [1] : vector<16x32xf32> to vector<16xf32>
    %129 = vector.shape_cast %128 : vector<16xf32> to vector<16x1xf32>
    %cst_83 = arith.constant 3.200000e+01 : f32
    %130 = vector.broadcast %cst_83 : f32 to vector<16x1xf32>
    %131 = arith.divf %129, %130 : vector<16x1xf32>
    %132 = vector.broadcast %124 : vector<16x1xf32> to vector<16x32xf32>
    %133 = arith.subf %120, %132 : vector<16x32xf32>
    %cst_84 = arith.constant 9.99999996E-13 : f32
    %134 = vector.broadcast %cst_84 : f32 to vector<16x1xf32>
    %135 = arith.addf %131, %134 : vector<16x1xf32>
    %136 = math.rsqrt %135 : vector<16x1xf32>
    %137 = vector.broadcast %136 : vector<16x1xf32> to vector<16x32xf32>
    %138 = arith.mulf %133, %137 : vector<16x32xf32>
    %c0_85 = arith.constant 0 : index
    %c0_86 = arith.constant 0 : index
    %139 = vector.load %arg12[%c0_85, %c0_86] : memref<1x32xf32, #tpu.memory_space<vmem>>, vector<1x32xf32>
    %140 = vector.broadcast %139 : vector<1x32xf32> to vector<16x32xf32>
    %141 = arith.mulf %138, %140 : vector<16x32xf32>
    %c0_87 = arith.constant 0 : index
    %c0_88 = arith.constant 0 : index
    %142 = vector.load %arg13[%c0_87, %c0_88] : memref<1x32xf32, #tpu.memory_space<vmem>>, vector<1x32xf32>
    %143 = vector.broadcast %142 : vector<1x32xf32> to vector<16x32xf32>
    %144 = arith.addf %141, %143 : vector<16x32xf32>
    %145 = arith.truncf %144 : vector<16x32xf32> to vector<16x32xbf16>
    %c0_89 = arith.constant 0 : index
    %c0_90 = arith.constant 0 : index
    %c0_91 = arith.constant 0 : index
    %146 = vector.load %arg14[%c0_89, %c0_90, %c0_91] : memref<1x16x32xbf16, #tpu.memory_space<vmem>>, vector<1x16x32xbf16>
    %147 = vector.shape_cast %146 : vector<1x16x32xbf16> to vector<16x32xbf16>
    %148 = vector.shape_cast %145 : vector<16x32xbf16> to vector<1x16x32xbf16>
    tpu.vector_store %arg14[%c0_89, %c0_90, %c0_91], %148 {strides = array<i32>} : memref<1x16x32xbf16, #tpu.memory_space<vmem>>, vector<1x16x32xbf16>,
    return
  }
  func.func @transform_0(%arg0: i32, %arg1: i32) -> (i32, i32, i32) {
    %c0_i32 = arith.constant 0 : i32
    %c0_i32_0 = arith.constant 0 : i32
    return %arg0, %arg1, %c0_i32 : i32, i32, i32
  }
  func.func @transform_1(%arg0: i32, %arg1: i32) -> (i32, i32, i32) {
    %c0_i32 = arith.constant 0 : i32
    %c0_i32_0 = arith.constant 0 : i32
    %c0_i32_1 = arith.constant 0 : i32
    return %arg0, %c0_i32, %c0_i32_0 : i32, i32, i32
  }
  func.func @transform_2(%arg0: i32, %arg1: i32) -> (i32, i32, i32) {
    %c0_i32 = arith.constant 0 : i32
    %c0_i32_0 = arith.constant 0 : i32
    return %arg0, %arg1, %c0_i32 : i32, i32, i32
  }
  func.func @transform_3(%arg0: i32, %arg1: i32) -> (i32, i32, i32) {
    %c0_i32 = arith.constant 0 : i32
    %c0_i32_0 = arith.constant 0 : i32
    %c0_i32_1 = arith.constant 0 : i32
    return %arg0, %c0_i32, %c0_i32_0 : i32, i32, i32
  }
  func.func @transform_4(%arg0: i32, %arg1: i32) -> (i32, i32) {
    %c0_i32 = arith.constant 0 : i32
    %c0_i32_0 = arith.constant 0 : i32
    %c0_i32_1 = arith.constant 0 : i32
    return %c0_i32, %c0_i32_0 : i32, i32
  }
  func.func @transform_5(%arg0: i32, %arg1: i32) -> (i32, i32) {
    %c0_i32 = arith.constant 0 : i32
    %c0_i32_0 = arith.constant 0 : i32
    %c0_i32_1 = arith.constant 0 : i32
    return %c0_i32, %c0_i32_0 : i32, i32
  }
  func.func @transform_6(%arg0: i32, %arg1: i32) -> (i32, i32) {
    %c0_i32 = arith.constant 0 : i32
    %c0_i32_0 = arith.constant 0 : i32
    %c0_i32_1 = arith.constant 0 : i32
    return %c0_i32, %c0_i32_0 : i32, i32
  }
  func.func @transform_7(%arg0: i32, %arg1: i32) -> (i32, i32) {
    %c0_i32 = arith.constant 0 : i32
    %c0_i32_0 = arith.constant 0 : i32
    %c0_i32_1 = arith.constant 0 : i32
    return %c0_i32, %c0_i32_0 : i32, i32
  }
  func.func @transform_8(%arg0: i32, %arg1: i32) -> (i32, i32) {
    %c0_i32 = arith.constant 0 : i32
    %c0_i32_0 = arith.constant 0 : i32
    %c0_i32_1 = arith.constant 0 : i32
    return %c0_i32, %c0_i32_0 : i32, i32
  }
  func.func @transform_9(%arg0: i32, %arg1: i32) -> (i32, i32) {
    %c0_i32 = arith.constant 0 : i32
    %c0_i32_0 = arith.constant 0 : i32
    %c0_i32_1 = arith.constant 0 : i32
    return %c0_i32, %c0_i32_0 : i32, i32
  }
  func.func @transform_10(%arg0: i32, %arg1: i32) -> (i32, i32) {
    %c0_i32 = arith.constant 0 : i32
    %c0_i32_0 = arith.constant 0 : i32
    %c0_i32_1 = arith.constant 0 : i32
    return %c0_i32, %c0_i32_0 : i32, i32
  }
  func.func @transform_11(%arg0: i32, %arg1: i32) -> (i32, i32) {
    %c0_i32 = arith.constant 0 : i32
    %c0_i32_0 = arith.constant 0 : i32
    %c0_i32_1 = arith.constant 0 : i32
    return %c0_i32, %c0_i32_0 : i32, i32
  }
  func.func @transform_12(%arg0: i32, %arg1: i32) -> (i32, i32, i32) {
    %c0_i32 = arith.constant 0 : i32
    %c0_i32_0 = arith.constant 0 : i32
    return %arg0, %arg1, %c0_i32 : i32, i32, i32
  }
}

</mosaic_0001>

<llo_original>
// kernel: tpu_custom_call.1
$region0: #{tpu_custom_call.1}
  #allocation0 [shape = 'u32[]', space=smem, size = 0x4, offset = 0x4, fixed_abs, tag = 'smem constant byte address 0x4 - core index']
  #allocation1 [shape = 'u32[144,128]{1,0:T(1,128)}', space=vmem, size = 0x12000, scoped, tag = 'internal scratch']
  %s0 = inlined_call_operand.hbm [shape: f32[8,128], index: 0, kind: input, shape index: {}]
  %s1 = inlined_call_operand.hbm [shape: f32[16,128], index: 1, kind: output, shape index: {}]
  %s2 = sld [smem:[#allocation0]]
  $region41: #{tpu_custom_call.1} parent=0
    _
  %s4 = ssub.s32 1, %s2
  %s5 = scalar_select 0, %s4, %s2
  $region1: #{tpu_custom_call.1} parent=0
    #allocation2 [shape = 'u8[4096]{0}', space=vmem, size = 0x1000, scoped, tag = 'input window, operand 0, single buffered']
    #allocation3 [shape = 's32[2]{0}', space=sflag, size = 0x8, scoped, tag = 'scoped memory for tpu_custom_call.1']
    #allocation4 [shape = 's32[2]{0}', space=sflag, size = 0x8, scoped, tag = 'scoped memory for tpu_custom_call.1']
    #allocation5 [shape = 'u8[8192]{0}', space=vmem, size = 0x2000, scoped, tag = 'output window, operand 0']
    %6 = vsyncpa [#allocation3], 0
    %7 = vsyncpa [#allocation4], 0
    %s8 = scalar_lea.sflag [#allocation4], 1
    %9 = vsyncpa %s8, 0
    loop: start=0, step=1, limit=4
    $region2: #{tpu_custom_call.1} parent=1 // loop_pre_header
      _
    $region3: #{tpu_custom_call.1} parent=1 // loop_header
      %s11 = sphi 0, %s15
      %p12 = scmp.ge.s32.totalorder %s11, 4
      %s19 = sphi 0, %s19
      %s21 = sphi 0, %s19
      %s22 = sphi 0, %s21
      %s36 = sphi 0, %s22
      %s42 = sphi 0, %s44
      %s45 = sphi 0, %s42
      %s46 = sphi 0, %s45
      %s62 = sphi 0, %s46
    $region4: #{tpu_custom_call.1} parent=1 // loop_header_branch
      %14 = sbr.rel (%p12) target = $region8
    $region5: #{tpu_custom_call.1} parent=1 // loop_body
      %s16 = ssub.s32 %s11, 1
      %s17 = ssub.s32 %s11, 2
      %s18 = sadd.s32 %s11, 1
      %s20 = sadd.s32 %s19, 1
      %p23 = scmp.eq.s32.totalorder %s11, 1
      %p24 = scmp.ne.s32.totalorder %s19, %s21
      %p25 = scmp.eq.s32.totalorder %s11, 0
      %p26 = por %p24, %p25
      %p27 = scmp.ne.s32.totalorder %s19, %s21
      %p28 = scmp.eq.s32.totalorder %s16, 1
      %p29 = por %p27, %p28
      %p30 = scmp.ne.s32.totalorder %s21, %s22
      %p31 = scmp.eq.s32.totalorder %s16, 0
      %p32 = por %p30, %p31
      %p33 = scmp.ne.s32.totalorder %s21, %s22
      %p34 = scmp.eq.s32.totalorder %s17, 1
      %p35 = por %p33, %p34
      %p37 = scmp.ne.s32.totalorder %s22, %s36
      %p38 = scmp.eq.s32.totalorder %s17, 0
      %p39 = por %p37, %p38
      %s40 = ssub.s32 %s11, %s18
      %p41 = scmp.eq.s32.totalorder %s40, 0
      %s43 = sadd.s32 %s42, 1
      %s44 = scalar_select %p41, %s42, %s43
      %p47 = pneg %p41
      %p48 = scmp.eq.s32.totalorder %s11, 1
      %p49 = por %p47, %p48
      %p50 = scmp.ne.s32.totalorder %s42, %s45
      %p51 = scmp.eq.s32.totalorder %s11, 0
      %p52 = por %p50, %p51
      %p53 = scmp.ne.s32.totalorder %s42, %s45
      %p54 = scmp.eq.s32.totalorder %s16, 1
      %p55 = por %p53, %p54
      %p56 = scmp.ne.s32.totalorder %s45, %s46
      %p57 = scmp.eq.s32.totalorder %s16, 0
      %p58 = por %p56, %p57
      %p59 = scmp.ne.s32.totalorder %s45, %s46
      %p60 = scmp.eq.s32.totalorder %s17, 1
      %p61 = por %p59, %p60
      %p63 = scmp.ne.s32.totalorder %s46, %s62
      %p64 = scmp.eq.s32.totalorder %s17, 0
      %p65 = por %p63, %p64
      %p66 = scmp.le.s32.totalorder 1, %s11
      %p67 = scmp.lt.s32.totalorder %s11, 3
      %p68 = pnand %p66, %p67
      %p69 = pneg %p68
      // Predicated region
      $region9: #{tpu_custom_call.1} parent=5 // pred_check
        _
      $region10: #{tpu_custom_call.1} parent=5 // pred_check_branch
        %71 = sbr.rel (%p68) target = $region12
      $region11: #{tpu_custom_call.1} parent=5 // pred_region
        %s72 = ssub.s32 %s11, 1
        // Predicated region
        $region13: #{tpu_custom_call.1} parent=11 // pred_check
          %p73 = pneg %p32
        $region14: #{tpu_custom_call.1} parent=11 // pred_check_branch
          %75 = sbr.rel (%p73) target = $region16
        $region15: #{tpu_custom_call.1} parent=11 // pred_region
          %s77 = ssub.s32 128, 128
          %78 = vsyncadd [#allocation3], %s77
          %s80 = sshll.u32 [#allocation2], 4
          %s81 = int_to_ptr.vmem [resolvable:$true] %s80
          %83 = dma.hbm_to_vmem [thread:$0]  %s0, 128, %s81, [#allocation3]
        $region16: #{tpu_custom_call.1} parent=11 // pred_fallthru
          _
      $region12: #{tpu_custom_call.1} parent=5 // pred_fallthru
        _
      %p84 = scmp.lt.s32.totalorder %s11, 2
      // Predicated region
      $region17: #{tpu_custom_call.1} parent=5 // pred_check
        %p85 = pneg %p84
      $region18: #{tpu_custom_call.1} parent=5 // pred_check_branch
        %87 = sbr.rel (%p85) target = $region20
      $region19: #{tpu_custom_call.1} parent=5 // pred_region
        _
      $region20: #{tpu_custom_call.1} parent=5 // pred_fallthru
        _
      %p88 = scmp.le.s32.totalorder 1, %s11
      %p89 = scmp.lt.s32.totalorder %s11, 3
      %p90 = pnand %p88, %p89
      %p91 = pneg %p90
      // Predicated region
      $region21: #{tpu_custom_call.1} parent=5 // pred_check
        _
      $region22: #{tpu_custom_call.1} parent=5 // pred_check_branch
        %93 = sbr.rel (%p90) target = $region24
      $region23: #{tpu_custom_call.1} parent=5 // pred_region
        %s94 = ssub.s32 %s11, 1
        // Predicated region
        $region25: #{tpu_custom_call.1} parent=23 // pred_check
          %p95 = pneg %p32
        $region26: #{tpu_custom_call.1} parent=23 // pred_check_branch
          %97 = sbr.rel (%p95) target = $region28
        $region27: #{tpu_custom_call.1} parent=23 // pred_region
          %98 = dma.done [#allocation3], 128
        $region28: #{tpu_custom_call.1} parent=23 // pred_fallthru
          _
        %p99 = pneg %p32
        %p100 = pneg %p29
        %p101 = pneg %p58
        %p102 = pneg %p55
        %s103 = sand.u32 %s45, 1
        %s104 = scalar_lea.sflag [#allocation4], %s103
        %s105 = sand.u32 %s45, 1
        %s106 = smul.addr %s105, 8
        %s107 = scalar_lea.vmem [#allocation5], %s106
        %v108 = vld [vmem:[#allocation2] sm:$0xff]
        %v109 = vmul.f32 %v108, 2.0
        %110 = vst [vmem:[%s107] sm:$0xff] %v109
        %s111 = sand.u32 %s45, 1
        %s112 = scalar_lea.sflag [#allocation4], %s111
        %s113 = sand.u32 %s45, 1
        %s114 = smul.addr %s113, 8
        %s115 = scalar_lea.vmem [#allocation5], %s114
        // Predicated region
        $region29: #{tpu_custom_call.1} parent=23 // pred_check
          %p116 = pneg %p55
        $region30: #{tpu_custom_call.1} parent=23 // pred_check_branch
          %118 = sbr.rel (%p116) target = $region32
        $region31: #{tpu_custom_call.1} parent=23 // pred_region
          %s120 = ssub.s32 128, 128
          %121 = vsyncadd %s112, %s120
          %s122 = smul.addr %s16, 128
          %s123 = scalar_lea.hbm %s1, %s122
          %s125 = sshll.u32 %s115, 4
          %s126 = int_to_ptr.vmem [resolvable:$true] %s125
          %128 = dma.vmem_to_hbm [thread:$0]  %s126, 128, %s123, %s112
        $region32: #{tpu_custom_call.1} parent=23 // pred_fallthru
          _
      $region24: #{tpu_custom_call.1} parent=5 // pred_fallthru
        _
      %p129 = scmp.le.s32.totalorder 2, %s11
      // Predicated region
      $region33: #{tpu_custom_call.1} parent=5 // pred_check
        %p130 = pneg %p129
      $region34: #{tpu_custom_call.1} parent=5 // pred_check_branch
        %132 = sbr.rel (%p130) target = $region36
      $region35: #{tpu_custom_call.1} parent=5 // pred_region
        %s133 = ssub.s32 %s11, 2
        // Predicated region
        $region37: #{tpu_custom_call.1} parent=35 // pred_check
          %p134 = pneg %p61
        $region38: #{tpu_custom_call.1} parent=35 // pred_check_branch
          %136 = sbr.rel (%p134) target = $region40
        $region39: #{tpu_custom_call.1} parent=35 // pred_region
          %s137 = sand.u32 %s46, 1
          %s138 = scalar_lea.sflag [#allocation4], %s137
          %s139 = sand.u32 %s46, 1
          %s140 = smul.addr %s139, 8
          %s141 = scalar_lea.vmem [#allocation5], %s140
          %142 = dma.done %s138, 128
        $region40: #{tpu_custom_call.1} parent=35 // pred_fallthru
          _
      $region36: #{tpu_custom_call.1} parent=5 // pred_fallthru
        _
    $region6: #{tpu_custom_call.1} parent=1 // loop_footer
      %s15 = sadd.s32 1, %s11
    $region7: #{tpu_custom_call.1} parent=1 // loop_footer_branch
      %10 = sbr.rel target = $region3
    $region8: #{tpu_custom_call.1} parent=1 // loop_exit
      _
    %143 = vsyncpa [#allocation3], 1
    %s144 = scalar_lea.sflag [#allocation3], 1
    %145 = vsyncpa %s144, 1
    %146 = vsyncpa [#allocation4], 1
    %s147 = scalar_lea.sflag [#allocation4], 1
    %148 = vsyncpa %s147, 1

// kernel: tpu_custom_call.1
$region0: #{tpu_custom_call.1}
  #allocation0 [shape = 'u32[]', space=smem, size = 0x4, offset = 0x4, fixed_abs, tag = 'smem constant byte address 0x4 - core index']
  #allocation1 [shape = 'u32[144,128]{1,0:T(1,128)}', space=vmem, size = 0x12000, scoped, tag = 'internal scratch']
  #allocation2 [shape = 'bf16[16,32]{1,0:T(16,128)(2,1)}', space=vmem, size = 0x1000, scoped, tag = 'scratch operand']
  #allocation3 [shape = 'bf16[16,32]{1,0:T(16,128)(2,1)}', space=vmem, size = 0x1000, scoped, tag = 'scratch operand']
  #allocation4 [shape = 'bf16[16,32]{1,0:T(16,128)(2,1)}', space=vmem, size = 0x1000, scoped, tag = 'scratch operand']
  #allocation5 [shape = 'bf16[16,32]{1,0:T(16,128)(2,1)}', space=vmem, size = 0x1000, scoped, tag = 'scratch operand']
  %s0 = inlined_call_operand.vmem [shape: bf16[2,16,32], index: 0, kind: input, shape index: {}]
  %s1 = inlined_call_operand.vmem [shape: bf16[2,16,32], index: 1, kind: input, shape index: {}]
  %s2 = inlined_call_operand.vmem [shape: f32[2,16,1], index: 2, kind: input, shape index: {}]
  %s3 = inlined_call_operand.hbm [shape: f32[2,1,16], index: 3, kind: input, shape index: {}]
  %s4 = inlined_call_operand.vmem [shape: bf16[32,32], index: 4, kind: input, shape index: {}]
  %s5 = inlined_call_operand.hbm [shape: f32[1,32], index: 5, kind: input, shape index: {}]
  %s6 = inlined_call_operand.hbm [shape: bf16[32,64], index: 6, kind: input, shape index: {}]
  %s7 = inlined_call_operand.hbm [shape: f32[1,64], index: 7, kind: input, shape index: {}]
  %s8 = inlined_call_operand.vmem [shape: bf16[32,32], index: 8, kind: input, shape index: {}]
  %s9 = inlined_call_operand.vmem [shape: f32[1,32], index: 9, kind: input, shape index: {}]
  %s10 = inlined_call_operand.vmem [shape: f32[1,32], index: 10, kind: input, shape index: {}]
  %s11 = inlined_call_operand.vmem [shape: f32[1,32], index: 11, kind: input, shape index: {}]
  %s12 = inlined_call_operand.hbm [shape: bf16[2,16,32], index: 12, kind: output, shape index: {}]
  %s13 = sld [smem:[#allocation0]]
  $region101: #{tpu_custom_call.1} parent=0
    _
  %s15 = ssub.s32 1, %s13
  %s16 = scalar_select 0, %s15, %s13
  $region1: #{tpu_custom_call.1} parent=0
    #allocation6 [shape = 'u8[1024]{0}', space=vmem, size = 0x400, scoped, tag = 'input window, operand 3']
    #allocation7 [shape = 's32[2]{0}', space=sflag, size = 0x8, scoped, tag = 'scoped memory for tpu_custom_call.1']
    #allocation8 [shape = 's32[2]{0}', space=sflag, size = 0x8, scoped, tag = 'scoped memory for tpu_custom_call.1']
    #allocation9 [shape = 'u8[512]{0}', space=vmem, size = 0x400, scoped, tag = 'input window, operand 5, single buffered']
    #allocation10 [shape = 's32[1]{0}', space=sflag, size = 0x4, scoped, tag = 'scoped memory for tpu_custom_call.1']
    #allocation11 [shape = 'u8[8192]{0}', space=vmem, size = 0x2000, scoped, tag = 'input window, operand 6, single buffered']
    #allocation12 [shape = 'u8[512]{0}', space=vmem, size = 0x400, scoped, tag = 'input window, operand 7, single buffered']
    #allocation13 [shape = 's32[1]{0}', space=sflag, size = 0x4, scoped, tag = 'scoped memory for tpu_custom_call.1']
    #allocation14 [shape = 'u8[8192]{0}', space=vmem, size = 0x2000, scoped, tag = 'output window, operand 0']
    %17 = vsyncpa [#allocation7], 0
    %s18 = scalar_lea.sflag [#allocation7], 1
    %19 = vsyncpa %s18, 0
    %20 = vsyncpa [#allocation10], 0
    %21 = vsyncpa [#allocation13], 0
    %22 = vsyncpa [#allocation8], 0
    %s23 = scalar_lea.sflag [#allocation8], 1
    %24 = vsyncpa %s23, 0
    loop: start=0, step=1, limit=4
    $region2: #{tpu_custom_call.1} parent=1 // loop_pre_header
      _
    $region3: #{tpu_custom_call.1} parent=1 // loop_header
      %s26 = sphi 0, %s30
      %p27 = scmp.ge.s32.totalorder %s26, 4
      %s33 = sphi 0, %s45
      %s34 = sphi 0, %s41
      %s35 = sphi 0, %s33
      %s36 = sphi 0, %s34
      %s37 = sphi 0, %s35
      %s38 = sphi 0, %s36
      %s50 = sphi 0, %s52
      %s53 = sphi 0, %s50
      %s54 = sphi 0, %s53
      %s70 = sphi 0, %s54
      %s76 = sphi 0, %s78
      %s79 = sphi 0, %s76
      %s80 = sphi 0, %s79
      %s96 = sphi 0, %s80
      %s104 = sphi 0, %s106
      %s107 = sphi 0, %s104
      %s108 = sphi 0, %s107
      %s124 = sphi 0, %s108
      %s130 = sphi 0, %s132
      %s133 = sphi 0, %s130
      %s134 = sphi 0, %s133
      %s150 = sphi 0, %s134
      %s154 = sphi 0, %s154
      %s156 = sphi 0, %s154
      %s157 = sphi 0, %s156
      %s171 = sphi 0, %s157
      %s175 = sphi 0, %s175
      %s177 = sphi 0, %s175
      %s178 = sphi 0, %s177
      %s192 = sphi 0, %s178
      %s196 = sphi 0, %s196
      %s198 = sphi 0, %s196
      %s199 = sphi 0, %s198
      %s213 = sphi 0, %s199
      %s217 = sphi 0, %s217
      %s219 = sphi 0, %s217
      %s220 = sphi 0, %s219
      %s234 = sphi 0, %s220
      %s238 = sphi 0, %s238
      %s240 = sphi 0, %s238
      %s241 = sphi 0, %s240
      %s255 = sphi 0, %s241
      %s259 = sphi 0, %s259
      %s261 = sphi 0, %s259
      %s262 = sphi 0, %s261
      %s276 = sphi 0, %s262
      %s280 = sphi 0, %s280
      %s282 = sphi 0, %s280
      %s283 = sphi 0, %s282
      %s297 = sphi 0, %s283
      %s301 = sphi 0, %s301
      %s303 = sphi 0, %s301
      %s304 = sphi 0, %s303
      %s318 = sphi 0, %s304
      %s326 = sphi 0, %s328
      %s329 = sphi 0, %s326
      %s330 = sphi 0, %s329
      %s346 = sphi 0, %s330
    $region4: #{tpu_custom_call.1} parent=1 // loop_header_branch
      %29 = sbr.rel (%p27) target = $region8
    $region5: #{tpu_custom_call.1} parent=1 // loop_body
      %s31 = ssub.s32 %s26, 1
      %s32 = ssub.s32 %s26, 2
      %s39 = sadd.s32 1, %s34
      %p40 = scmp.ge.s32.totalorder %s39, 1
      %s41 = scalar_select %p40, 0, %s39
      %s42 = sadd.s32 1, %s33
      %s43 = scalar_select %p40, %s42, %s33
      %p44 = scmp.ge.s32.totalorder %s43, 2
      %s45 = scalar_select %p44, 0, %s43
      %s46 = ssub.s32 %s33, %s45
      %s47 = ssub.s32 %s34, %s41
      %s48 = sor.u32 %s46, %s47
      %p49 = scmp.eq.s32.totalorder %s48, 0
      %s51 = sadd.s32 %s50, 1
      %s52 = scalar_select %p49, %s50, %s51
      %p55 = pneg %p49
      %p56 = scmp.eq.s32.totalorder %s26, 1
      %p57 = por %p55, %p56
      %p58 = scmp.ne.s32.totalorder %s50, %s53
      %p59 = scmp.eq.s32.totalorder %s26, 0
      %p60 = por %p58, %p59
      %p61 = scmp.ne.s32.totalorder %s50, %s53
      %p62 = scmp.eq.s32.totalorder %s31, 1
      %p63 = por %p61, %p62
      %p64 = scmp.ne.s32.totalorder %s53, %s54
      %p65 = scmp.eq.s32.totalorder %s31, 0
      %p66 = por %p64, %p65
      %p67 = scmp.ne.s32.totalorder %s53, %s54
      %p68 = scmp.eq.s32.totalorder %s32, 1
      %p69 = por %p67, %p68
      %p71 = scmp.ne.s32.totalorder %s54, %s70
      %p72 = scmp.eq.s32.totalorder %s32, 0
      %p73 = por %p71, %p72
      %s74 = ssub.s32 %s33, %s45
      %p75 = scmp.eq.s32.totalorder %s74, 0
      %s77 = sadd.s32 %s76, 1
      %s78 = scalar_select %p75, %s76, %s77
      %p81 = pneg %p75
      %p82 = scmp.eq.s32.totalorder %s26, 1
      %p83 = por %p81, %p82
      %p84 = scmp.ne.s32.totalorder %s76, %s79
      %p85 = scmp.eq.s32.totalorder %s26, 0
      %p86 = por %p84, %p85
      %p87 = scmp.ne.s32.totalorder %s76, %s79
      %p88 = scmp.eq.s32.totalorder %s31, 1
      %p89 = por %p87, %p88
      %p90 = scmp.ne.s32.totalorder %s79, %s80
      %p91 = scmp.eq.s32.totalorder %s31, 0
      %p92 = por %p90, %p91
      %p93 = scmp.ne.s32.totalorder %s79, %s80
      %p94 = scmp.eq.s32.totalorder %s32, 1
      %p95 = por %p93, %p94
      %p97 = scmp.ne.s32.totalorder %s80, %s96
      %p98 = scmp.eq.s32.totalorder %s32, 0
      %p99 = por %p97, %p98
      %s100 = ssub.s32 %s33, %s45
      %s101 = ssub.s32 %s34, %s41
      %s102 = sor.u32 %s100, %s101
      %p103 = scmp.eq.s32.totalorder %s102, 0
      %s105 = sadd.s32 %s104, 1
      %s106 = scalar_select %p103, %s104, %s105
      %p109 = pneg %p103
      %p110 = scmp.eq.s32.totalorder %s26, 1
      %p111 = por %p109, %p110
      %p112 = scmp.ne.s32.totalorder %s104, %s107
      %p113 = scmp.eq.s32.totalorder %s26, 0
      %p114 = por %p112, %p113
      %p115 = scmp.ne.s32.totalorder %s104, %s107
      %p116 = scmp.eq.s32.totalorder %s31, 1
      %p117 = por %p115, %p116
      %p118 = scmp.ne.s32.totalorder %s107, %s108
      %p119 = scmp.eq.s32.totalorder %s31, 0
      %p120 = por %p118, %p119
      %p121 = scmp.ne.s32.totalorder %s107, %s108
      %p122 = scmp.eq.s32.totalorder %s32, 1
      %p123 = por %p121, %p122
      %p125 = scmp.ne.s32.totalorder %s108, %s124
      %p126 = scmp.eq.s32.totalorder %s32, 0
      %p127 = por %p125, %p126
      %s128 = ssub.s32 %s33, %s45
      %p129 = scmp.eq.s32.totalorder %s128, 0
      %s131 = sadd.s32 %s130, 1
      %s132 = scalar_select %p129, %s130, %s131
      %p135 = pneg %p129
      %p136 = scmp.eq.s32.totalorder %s26, 1
      %p137 = por %p135, %p136
      %p138 = scmp.ne.s32.totalorder %s130, %s133
      %p139 = scmp.eq.s32.totalorder %s26, 0
      %p140 = por %p138, %p139
      %p141 = scmp.ne.s32.totalorder %s130, %s133
      %p142 = scmp.eq.s32.totalorder %s31, 1
      %p143 = por %p141, %p142
      %p144 = scmp.ne.s32.totalorder %s133, %s134
      %p145 = scmp.eq.s32.totalorder %s31, 0
      %p146 = por %p144, %p145
      %p147 = scmp.ne.s32.totalorder %s133, %s134
      %p148 = scmp.eq.s32.totalorder %s32, 1
      %p149 = por %p147, %p148
      %p151 = scmp.ne.s32.totalorder %s134, %s150
      %p152 = scmp.eq.s32.totalorder %s32, 0
      %p153 = por %p151, %p152
      %s155 = sadd.s32 %s154, 1
      %p158 = scmp.eq.s32.totalorder %s26, 1
      %p159 = scmp.ne.s32.totalorder %s154, %s156
      %p160 = scmp.eq.s32.totalorder %s26, 0
      %p161 = por %p159, %p160
      %p162 = scmp.ne.s32.totalorder %s154, %s156
      %p163 = scmp.eq.s32.totalorder %s31, 1
      %p164 = por %p162, %p163
      %p165 = scmp.ne.s32.totalorder %s156, %s157
      %p166 = scmp.eq.s32.totalorder %s31, 0
      %p167 = por %p165, %p166
      %p168 = scmp.ne.s32.totalorder %s156, %s157
      %p169 = scmp.eq.s32.totalorder %s32, 1
      %p170 = por %p168, %p169
      %p172 = scmp.ne.s32.totalorder %s157, %s171
      %p173 = scmp.eq.s32.totalorder %s32, 0
      %p174 = por %p172, %p173
      %s176 = sadd.s32 %s175, 1
      %p179 = scmp.eq.s32.totalorder %s26, 1
      %p180 = scmp.ne.s32.totalorder %s175, %s177
      %p181 = scmp.eq.s32.totalorder %s26, 0
      %p182 = por %p180, %p181
      %p183 = scmp.ne.s32.totalorder %s175, %s177
      %p184 = scmp.eq.s32.totalorder %s31, 1
      %p185 = por %p183, %p184
      %p186 = scmp.ne.s32.totalorder %s177, %s178
      %p187 = scmp.eq.s32.totalorder %s31, 0
      %p188 = por %p186, %p187
      %p189 = scmp.ne.s32.totalorder %s177, %s178
      %p190 = scmp.eq.s32.totalorder %s32, 1
      %p191 = por %p189, %p190
      %p193 = scmp.ne.s32.totalorder %s178, %s192
      %p194 = scmp.eq.s32.totalorder %s32, 0
      %p195 = por %p193, %p194
      %s197 = sadd.s32 %s196, 1
      %p200 = scmp.eq.s32.totalorder %s26, 1
      %p201 = scmp.ne.s32.totalorder %s196, %s198
      %p202 = scmp.eq.s32.totalorder %s26, 0
      %p203 = por %p201, %p202
      %p204 = scmp.ne.s32.totalorder %s196, %s198
      %p205 = scmp.eq.s32.totalorder %s31, 1
      %p206 = por %p204, %p205
      %p207 = scmp.ne.s32.totalorder %s198, %s199
      %p208 = scmp.eq.s32.totalorder %s31, 0
      %p209 = por %p207, %p208
      %p210 = scmp.ne.s32.totalorder %s198, %s199
      %p211 = scmp.eq.s32.totalorder %s32, 1
      %p212 = por %p210, %p211
      %p214 = scmp.ne.s32.totalorder %s199, %s213
      %p215 = scmp.eq.s32.totalorder %s32, 0
      %p216 = por %p214, %p215
      %s218 = sadd.s32 %s217, 1
      %p221 = scmp.eq.s32.totalorder %s26, 1
      %p222 = scmp.ne.s32.totalorder %s217, %s219
      %p223 = scmp.eq.s32.totalorder %s26, 0
      %p224 = por %p222, %p223
      %p225 = scmp.ne.s32.totalorder %s217, %s219
      %p226 = scmp.eq.s32.totalorder %s31, 1
      %p227 = por %p225, %p226
      %p228 = scmp.ne.s32.totalorder %s219, %s220
      %p229 = scmp.eq.s32.totalorder %s31, 0
      %p230 = por %p228, %p229
      %p231 = scmp.ne.s32.totalorder %s219, %s220
      %p232 = scmp.eq.s32.totalorder %s32, 1
      %p233 = por %p231, %p232
      %p235 = scmp.ne.s32.totalorder %s220, %s234
      %p236 = scmp.eq.s32.totalorder %s32, 0
      %p237 = por %p235, %p236
      %s239 = sadd.s32 %s238, 1
      %p242 = scmp.eq.s32.totalorder %s26, 1
      %p243 = scmp.ne.s32.totalorder %s238, %s240
      %p244 = scmp.eq.s32.totalorder %s26, 0
      %p245 = por %p243, %p244
      %p246 = scmp.ne.s32.totalorder %s238, %s240
      %p247 = scmp.eq.s32.totalorder %s31, 1
      %p248 = por %p246, %p247
      %p249 = scmp.ne.s32.totalorder %s240, %s241
      %p250 = scmp.eq.s32.totalorder %s31, 0
      %p251 = por %p249, %p250
      %p252 = scmp.ne.s32.totalorder %s240, %s241
      %p253 = scmp.eq.s32.totalorder %s32, 1
      %p254 = por %p252, %p253
      %p256 = scmp.ne.s32.totalorder %s241, %s255
      %p257 = scmp.eq.s32.totalorder %s32, 0
      %p258 = por %p256, %p257
      %s260 = sadd.s32 %s259, 1
      %p263 = scmp.eq.s32.totalorder %s26, 1
      %p264 = scmp.ne.s32.totalorder %s259, %s261
      %p265 = scmp.eq.s32.totalorder %s26, 0
      %p266 = por %p264, %p265
      %p267 = scmp.ne.s32.totalorder %s259, %s261
      %p268 = scmp.eq.s32.totalorder %s31, 1
      %p269 = por %p267, %p268
      %p270 = scmp.ne.s32.totalorder %s261, %s262
      %p271 = scmp.eq.s32.totalorder %s31, 0
      %p272 = por %p270, %p271
      %p273 = scmp.ne.s32.totalorder %s261, %s262
      %p274 = scmp.eq.s32.totalorder %s32, 1
      %p275 = por %p273, %p274
      %p277 = scmp.ne.s32.totalorder %s262, %s276
      %p278 = scmp.eq.s32.totalorder %s32, 0
      %p279 = por %p277, %p278
      %s281 = sadd.s32 %s280, 1
      %p284 = scmp.eq.s32.totalorder %s26, 1
      %p285 = scmp.ne.s32.totalorder %s280, %s282
      %p286 = scmp.eq.s32.totalorder %s26, 0
      %p287 = por %p285, %p286
      %p288 = scmp.ne.s32.totalorder %s280, %s282
      %p289 = scmp.eq.s32.totalorder %s31, 1
      %p290 = por %p288, %p289
      %p291 = scmp.ne.s32.totalorder %s282, %s283
      %p292 = scmp.eq.s32.totalorder %s31, 0
      %p293 = por %p291, %p292
      %p294 = scmp.ne.s32.totalorder %s282, %s283
      %p295 = scmp.eq.s32.totalorder %s32, 1
      %p296 = por %p294, %p295
      %p298 = scmp.ne.s32.totalorder %s283, %s297
      %p299 = scmp.eq.s32.totalorder %s32, 0
      %p300 = por %p298, %p299
      %s302 = sadd.s32 %s301, 1
      %p305 = scmp.eq.s32.totalorder %s26, 1
      %p306 = scmp.ne.s32.totalorder %s301, %s303
      %p307 = scmp.eq.s32.totalorder %s26, 0
      %p308 = por %p306, %p307
      %p309 = scmp.ne.s32.totalorder %s301, %s303
      %p310 = scmp.eq.s32.totalorder %s31, 1
      %p311 = por %p309, %p310
      %p312 = scmp.ne.s32.totalorder %s303, %s304
      %p313 = scmp.eq.s32.totalorder %s31, 0
      %p314 = por %p312, %p313
      %p315 = scmp.ne.s32.totalorder %s303, %s304
      %p316 = scmp.eq.s32.totalorder %s32, 1
      %p317 = por %p315, %p316
      %p319 = scmp.ne.s32.totalorder %s304, %s318
      %p320 = scmp.eq.s32.totalorder %s32, 0
      %p321 = por %p319, %p320
      %s322 = ssub.s32 %s33, %s45
      %s323 = ssub.s32 %s34, %s41
      %s324 = sor.u32 %s322, %s323
      %p325 = scmp.eq.s32.totalorder %s324, 0
      %s327 = sadd.s32 %s326, 1
      %s328 = scalar_select %p325, %s326, %s327
      %p331 = pneg %p325
      %p332 = scmp.eq.s32.totalorder %s26, 1
      %p333 = por %p331, %p332
      %p334 = scmp.ne.s32.totalorder %s326, %s329
      %p335 = scmp.eq.s32.totalorder %s26, 0
      %p336 = por %p334, %p335
      %p337 = scmp.ne.s32.totalorder %s326, %s329
      %p338 = scmp.eq.s32.totalorder %s31, 1
      %p339 = por %p337, %p338
      %p340 = scmp.ne.s32.totalorder %s329, %s330
      %p341 = scmp.eq.s32.totalorder %s31, 0
      %p342 = por %p340, %p341
      %p343 = scmp.ne.s32.totalorder %s329, %s330
      %p344 = scmp.eq.s32.totalorder %s32, 1
      %p345 = por %p343, %p344
      %p347 = scmp.ne.s32.totalorder %s330, %s346
      %p348 = scmp.eq.s32.totalorder %s32, 0
      %p349 = por %p347, %p348
      %p350 = scmp.le.s32.totalorder 1, %s26
      %p351 = scmp.lt.s32.totalorder %s26, 3
      %p352 = pnand %p350, %p351
      %p353 = pneg %p352
      // Predicated region
      $region9: #{tpu_custom_call.1} parent=5 // pred_check
        _
      $region10: #{tpu_custom_call.1} parent=5 // pred_check_branch
        %355 = sbr.rel (%p352) target = $region12
      $region11: #{tpu_custom_call.1} parent=5 // pred_region
        %s356 = ssub.s32 %s26, 1
        // Predicated region
        $region13: #{tpu_custom_call.1} parent=11 // pred_check
          %p357 = pneg %p167
        $region14: #{tpu_custom_call.1} parent=11 // pred_check_branch
          %359 = sbr.rel (%p357) target = $region16
        $region15: #{tpu_custom_call.1} parent=11 // pred_region
          _
        $region16: #{tpu_custom_call.1} parent=11 // pred_fallthru
          _
        // Predicated region
        $region17: #{tpu_custom_call.1} parent=11 // pred_check
          %p360 = pneg %p188
        $region18: #{tpu_custom_call.1} parent=11 // pred_check_branch
          %362 = sbr.rel (%p360) target = $region20
        $region19: #{tpu_custom_call.1} parent=11 // pred_region
          %s364 = ssub.s32 16, 16
          %365 = vsyncadd [#allocation10], %s364
          %s367 = sshll.u32 [#allocation9], 4
          %s368 = int_to_ptr.vmem [resolvable:$true] %s367
          %370 = dma.hbm_to_vmem [thread:$0]  %s5, 16, %s368, [#allocation10]
        $region20: #{tpu_custom_call.1} parent=11 // pred_fallthru
          _
        // Predicated region
        $region21: #{tpu_custom_call.1} parent=11 // pred_check
          %p371 = pneg %p209
        $region22: #{tpu_custom_call.1} parent=11 // pred_check_branch
          %373 = sbr.rel (%p371) target = $region24
        $region23: #{tpu_custom_call.1} parent=11 // pred_region
          %s375 = ssub.s32 256, 256
          %376 = vsyncadd [#allocation10], %s375
          %s377 = sshll.u32 [#allocation11], 4
          %s378 = int_to_ptr.vmem [resolvable:$true] %s377
          %383 = dma.hbm_to_vmem [thread:$0]  %s6, 256, %s378, [#allocation10], 64, 64, 4
        $region24: #{tpu_custom_call.1} parent=11 // pred_fallthru
          _
        // Predicated region
        $region25: #{tpu_custom_call.1} parent=11 // pred_check
          %p384 = pneg %p230
        $region26: #{tpu_custom_call.1} parent=11 // pred_check_branch
          %386 = sbr.rel (%p384) target = $region28
        $region27: #{tpu_custom_call.1} parent=11 // pred_region
          %s388 = ssub.s32 16, 16
          %389 = vsyncadd [#allocation13], %s388
          %s391 = sshll.u32 [#allocation12], 4
          %s392 = int_to_ptr.vmem [resolvable:$true] %s391
          %394 = dma.hbm_to_vmem [thread:$0]  %s7, 16, %s392, [#allocation13]
        $region28: #{tpu_custom_call.1} parent=11 // pred_fallthru
          _
        // Predicated region
        $region29: #{tpu_custom_call.1} parent=11 // pred_check
          %p395 = pneg %p251
        $region30: #{tpu_custom_call.1} parent=11 // pred_check_branch
          %397 = sbr.rel (%p395) target = $region32
        $region31: #{tpu_custom_call.1} parent=11 // pred_region
          _
        $region32: #{tpu_custom_call.1} parent=11 // pred_fallthru
          _
        // Predicated region
        $region33: #{tpu_custom_call.1} parent=11 // pred_check
          %p398 = pneg %p272
        $region34: #{tpu_custom_call.1} parent=11 // pred_check_branch
          %400 = sbr.rel (%p398) target = $region36
        $region35: #{tpu_custom_call.1} parent=11 // pred_region
          _
        $region36: #{tpu_custom_call.1} parent=11 // pred_fallthru
          _
        // Predicated region
        $region37: #{tpu_custom_call.1} parent=11 // pred_check
          %p401 = pneg %p293
        $region38: #{tpu_custom_call.1} parent=11 // pred_check_branch
          %403 = sbr.rel (%p401) target = $region40
        $region39: #{tpu_custom_call.1} parent=11 // pred_region
          _
        $region40: #{tpu_custom_call.1} parent=11 // pred_fallthru
          _
        // Predicated region
        $region41: #{tpu_custom_call.1} parent=11 // pred_check
          %p404 = pneg %p314
        $region42: #{tpu_custom_call.1} parent=11 // pred_check_branch
          %406 = sbr.rel (%p404) target = $region44
        $region43: #{tpu_custom_call.1} parent=11 // pred_region
          _
        $region44: #{tpu_custom_call.1} parent=11 // pred_fallthru
          _
      $region12: #{tpu_custom_call.1} parent=5 // pred_fallthru
        _
      %p407 = scmp.lt.s32.totalorder %s26, 2
      // Predicated region
      $region45: #{tpu_custom_call.1} parent=5 // pred_check
        %p408 = pneg %p407
      $region46: #{tpu_custom_call.1} parent=5 // pred_check_branch
        %410 = sbr.rel (%p408) target = $region48
      $region47: #{tpu_custom_call.1} parent=5 // pred_region
        // Predicated region
        $region49: #{tpu_custom_call.1} parent=47 // pred_check
          %p411 = pneg %p60
        $region50: #{tpu_custom_call.1} parent=47 // pred_check_branch
          %413 = sbr.rel (%p411) target = $region52
        $region51: #{tpu_custom_call.1} parent=47 // pred_region
          %s414 = smul.u32 2, %s34
          %p415 = scmp.lt.s32.totalorder %s33, 1
          %s416 = scalar_select %p415, %s33, 1
          %p417 = scmp.lt.s32.totalorder %s414, 1
          %s418 = scalar_select %p417, %s414, 1
          %s419 = smul.addr %s416, 2
          %s420 = sadd.s32 %s418, %s419
          %s421 = smul.addr %s420, 4
          %s422 = scalar_lea.vmem %s0, %s421
          %s423 = smul.u32 2, %s34
        $region52: #{tpu_custom_call.1} parent=47 // pred_fallthru
          _
        // Predicated region
        $region53: #{tpu_custom_call.1} parent=47 // pred_check
          %p424 = pneg %p86
        $region54: #{tpu_custom_call.1} parent=47 // pred_check_branch
          %426 = sbr.rel (%p424) target = $region56
        $region55: #{tpu_custom_call.1} parent=47 // pred_region
          %p427 = scmp.lt.s32.totalorder %s33, 1
          %s428 = scalar_select %p427, %s33, 1
          %s429 = smul.addr %s428, 2
          %s430 = smul.addr %s429, 4
          %s431 = scalar_lea.vmem %s1, %s430
        $region56: #{tpu_custom_call.1} parent=47 // pred_fallthru
          _
        // Predicated region
        $region57: #{tpu_custom_call.1} parent=47 // pred_check
          %p432 = pneg %p114
        $region58: #{tpu_custom_call.1} parent=47 // pred_check_branch
          %434 = sbr.rel (%p432) target = $region60
        $region59: #{tpu_custom_call.1} parent=47 // pred_region
          %s435 = smul.u32 2, %s34
          %p436 = scmp.lt.s32.totalorder %s33, 1
          %s437 = scalar_select %p436, %s33, 1
          %p438 = scmp.lt.s32.totalorder %s435, 1
          %s439 = scalar_select %p438, %s435, 1
          %s440 = smul.addr %s437, 2
          %s441 = sadd.s32 %s439, %s440
          %s442 = smul.addr %s441, 8
          %s443 = scalar_lea.vmem %s2, %s442
          %s444 = smul.u32 2, %s34
        $region60: #{tpu_custom_call.1} parent=47 // pred_fallthru
          _
        // Predicated region
        $region61: #{tpu_custom_call.1} parent=47 // pred_check
          %p445 = pneg %p140
        $region62: #{tpu_custom_call.1} parent=47 // pred_check_branch
          %447 = sbr.rel (%p445) target = $region64
        $region63: #{tpu_custom_call.1} parent=47 // pred_region
          %s448 = sand.u32 %s130, 1
          %s449 = scalar_lea.sflag [#allocation7], %s448
          %s450 = sand.u32 %s130, 1
          %s451 = scalar_lea.vmem [#allocation6], %s450
          %s453 = ssub.s32 16, 16
          %454 = vsyncadd %s449, %s453
          %s455 = smul.addr %s33, 16
          %s456 = scalar_lea.hbm %s3, %s455
          %s458 = sshll.u32 %s451, 4
          %s459 = int_to_ptr.vmem [resolvable:$true] %s458
          %461 = dma.hbm_to_vmem [thread:$0]  %s456, 16, %s459, %s449
        $region64: #{tpu_custom_call.1} parent=47 // pred_fallthru
          _
      $region48: #{tpu_custom_call.1} parent=5 // pred_fallthru
        _
      %p462 = scmp.le.s32.totalorder 1, %s26
      %p463 = scmp.lt.s32.totalorder %s26, 3
      %p464 = pnand %p462, %p463
      %p465 = pneg %p464
      // Predicated region
      $region65: #{tpu_custom_call.1} parent=5 // pred_check
        _
      $region66: #{tpu_custom_call.1} parent=5 // pred_check_branch
        %467 = sbr.rel (%p464) target = $region68
      $region67: #{tpu_custom_call.1} parent=5 // pred_region
        %s468 = ssub.s32 %s26, 1
        %s469 = sand.u32 %s133, 1
        %s470 = scalar_lea.sflag [#allocation7], %s469
        %s471 = sand.u32 %s133, 1
        %s472 = scalar_lea.vmem [#allocation6], %s471
        // Predicated region
        $region69: #{tpu_custom_call.1} parent=67 // pred_check
          %p473 = pneg %p146
        $region70: #{tpu_custom_call.1} parent=67 // pred_check_branch
          %475 = sbr.rel (%p473) target = $region72
        $region71: #{tpu_custom_call.1} parent=67 // pred_region
          %476 = dma.done %s470, 16
        $region72: #{tpu_custom_call.1} parent=67 // pred_fallthru
          _
        // Predicated region
        $region73: #{tpu_custom_call.1} parent=67 // pred_check
          %p477 = pneg %p188
        $region74: #{tpu_custom_call.1} parent=67 // pred_check_branch
          %479 = sbr.rel (%p477) target = $region76
        $region75: #{tpu_custom_call.1} parent=67 // pred_region
          %480 = dma.done [#allocation10], 16
        $region76: #{tpu_custom_call.1} parent=67 // pred_fallthru
          _
        // Predicated region
        $region77: #{tpu_custom_call.1} parent=67 // pred_check
          %p481 = pneg %p209
        $region78: #{tpu_custom_call.1} parent=67 // pred_check_branch
          %483 = sbr.rel (%p481) target = $region80
        $region79: #{tpu_custom_call.1} parent=67 // pred_region
          %484 = dma.done [#allocation10], 256
        $region80: #{tpu_custom_call.1} parent=67 // pred_fallthru
          _
        // Predicated region
        $region81: #{tpu_custom_call.1} parent=67 // pred_check
          %p485 = pneg %p230
        $region82: #{tpu_custom_call.1} parent=67 // pred_check_branch
          %487 = sbr.rel (%p485) target = $region84
        $region83: #{tpu_custom_call.1} parent=67 // pred_region
          %488 = dma.done [#allocation13], 16
        $region84: #{tpu_custom_call.1} parent=67 // pred_fallthru
          _
        %s489 = smul.u32 2, %s36
        %p490 = scmp.lt.s32.totalorder %s35, 1
        %s491 = scalar_select %p490, %s35, 1
        %p492 = scmp.lt.s32.totalorder %s489, 1
        %s493 = scalar_select %p492, %s489, 1
        %s494 = smul.addr %s491, 2
        %s495 = sadd.s32 %s493, %s494
        %s496 = smul.addr %s495, 4
        %s497 = scalar_lea.vmem %s0, %s496
        %p498 = pneg %p66
        %p499 = pneg %p63
        %p500 = scmp.lt.s32.totalorder %s35, 1
        %s501 = scalar_select %p500, %s35, 1
        %s502 = smul.addr %s501, 2
        %s503 = smul.addr %s502, 4
        %s504 = scalar_lea.vmem %s1, %s503
        %p505 = pneg %p92
        %p506 = pneg %p89
        %s507 = smul.u32 2, %s36
        %p508 = scmp.lt.s32.totalorder %s35, 1
        %s509 = scalar_select %p508, %s35, 1
        %p510 = scmp.lt.s32.totalorder %s507, 1
        %s511 = scalar_select %p510, %s507, 1
        %s512 = smul.addr %s509, 2
        %s513 = sadd.s32 %s511, %s512
        %s514 = smul.addr %s513, 8
        %s515 = scalar_lea.vmem %s2, %s514
        %p516 = pneg %p120
        %p517 = pneg %p117
        %s518 = sand.u32 %s133, 1
        %s519 = scalar_lea.sflag [#allocation7], %s518
        %s520 = sand.u32 %s133, 1
        %s521 = scalar_lea.vmem [#allocation6], %s520
        %p522 = pneg %p146
        %p523 = pneg %p143
        %p524 = pneg %p167
        %p525 = pneg %p164
        %p526 = pneg %p188
        %p527 = pneg %p185
        %p528 = pneg %p209
        %p529 = pneg %p206
        %p530 = pneg %p230
        %p531 = pneg %p227
        %p532 = pneg %p251
        %p533 = pneg %p248
        %p534 = pneg %p272
        %p535 = pneg %p269
        %p536 = pneg %p293
        %p537 = pneg %p290
        %p538 = pneg %p314
        %p539 = pneg %p311
        %p540 = pneg %p342
        %p541 = pneg %p339
        %s542 = sand.u32 %s329, 1
        %s543 = scalar_lea.sflag [#allocation8], %s542
        %s544 = sand.u32 %s329, 1
        %s545 = smul.addr %s544, 8
        %s546 = scalar_lea.vmem [#allocation14], %s545
        %s547 = smul.u32 2, %s36
        %p548 = scmp.lt.s32.totalorder %s35, 1
        %s549 = scalar_select %p548, %s35, 1
        %p550 = scmp.lt.s32.totalorder %s547, 1
        %s551 = scalar_select %p550, %s547, 1
        %s552 = smul.addr %s549, 2
        %s553 = sadd.s32 %s551, %s552
        %s554 = smul.addr %s553, 4
        %s555 = scalar_lea.vmem %s0, %s554
        %s556 = smul.u32 2, %s36
        %p557 = scmp.lt.s32.totalorder %s35, 1
        %s558 = scalar_select %p557, %s35, 1
        %s559 = smul.addr %s558, 2
        %s560 = smul.addr %s559, 4
        %s561 = scalar_lea.vmem %s1, %s560
        %s562 = smul.u32 2, %s36
        %p563 = scmp.lt.s32.totalorder %s35, 1
        %s564 = scalar_select %p563, %s35, 1
        %p565 = scmp.lt.s32.totalorder %s562, 1
        %s566 = scalar_select %p565, %s562, 1
        %s567 = smul.addr %s564, 2
        %s568 = sadd.s32 %s566, %s567
        %s569 = smul.addr %s568, 8
        %s570 = scalar_lea.vmem %s2, %s569
        %s571 = smul.u32 2, %s36
        %s572 = smul.u32 2, %s36
        %p574 = scmp.eq.s32.totalorder %s36, 0
        // Predicated region
        $region85: #{tpu_custom_call.1} parent=67 // pred_check
          %p575 = pneg %p574
        $region86: #{tpu_custom_call.1} parent=67 // pred_check_branch
          %577 = sbr.rel (%p575) target = $region88
        $region87: #{tpu_custom_call.1} parent=67 // pred_region
          %v578 = vld [vmem:[%s561] sm:$0xf]
          %v579 = vld [vmem:[%s561 + $0x4] sm:$0xf]
          %v580 = vld [vmem:[#allocation11] sm:$0xf]
          %v581 = vld [vmem:[#allocation11 + $0x4] sm:$0xf]
          %v582 = vld [vmem:[#allocation11 + $0x8] sm:$0xf]
          %v583 = vld [vmem:[#allocation11 + $0xc] sm:$0xf]
          %v584 = vld [vmem:[#allocation12] sm:$0x1]
          %v586 = vlaneseq
          %v587 = vshrl.u32 %v586, 7
          %v588 = vsub.s32 0, %v587
          %v589 = vrot.slane %v584, %v588
          %v593 = vunpack.c.l.b16 %v578
          %v594 = vunpack.c.l.b16 %v579
          %v595 = vpack.c.b16 %v594, %v593
          %v600 = vunpack.c.l.b16 %v580
          %v601 = vunpack.c.l.b16 %v581
          %v602 = vunpack.c.l.b16 %v582
          %v603 = vunpack.c.l.b16 %v583
          %v604 = vpack.c.b16 %v601, %v600
          %v605 = vpack.c.b16 %v603, %v602
          %vm608 = vcmask 261120
          %v610 = vsel %vm608, %v595, 0
          %612 = vmatprep.subr.bf16.mxu0 0
          %613 = vmatpush1.bf16.msra.mxu0 %v604
          %614 = vmatprep.subr.bf16.mxu0 0
          %615 = vmatpush1.bf16.msra.mxu0 %v605
          %616 = vmatprep.subr.bf16.mxu0 0
          %617 = vmatpush1.bf16.msra.mxu0 0
          %618 = vmatprep.subr.bf16.mxu0 0
          %619 = vmatpush1.bf16.msra.mxu0 0
          %620 = vmatprep.subr.bf16.mxu0 0
          %621 = vmatpush1.bf16.msra.mxu0 0
          %622 = vmatprep.subr.bf16.mxu0 0
          %623 = vmatpush1.bf16.msra.mxu0 0
          %624 = vmatprep.subr.bf16.mxu0 0
          %625 = vmatpush1.bf16.msra.mxu0 0
          %626 = vmatprep.subr.bf16.mxu0 0
          %627 = vmatpush1.bf16.msra.mxu0 0
          %628 = vmatprep.subr.bf16.mxu0 0
          %629 = vmatpush1.bf16.msra.mxu0 0
          %630 = vmatprep.subr.bf16.mxu0 0
          %631 = vmatpush1.bf16.msra.mxu0 0
          %632 = vmatprep.subr.bf16.mxu0 0
          %633 = vmatpush1.bf16.msra.mxu0 0
          %634 = vmatprep.subr.bf16.mxu0 0
          %635 = vmatpush1.bf16.msra.mxu0 0
          %636 = vmatprep.subr.bf16.mxu0 0
          %637 = vmatpush1.bf16.msra.mxu0 0
          %638 = vmatprep.subr.bf16.mxu0 0
          %639 = vmatpush1.bf16.msra.mxu0 0
          %640 = vmatprep.subr.bf16.mxu0 0
          %641 = vmatpush1.bf16.msra.mxu0 0
          %642 = vmatprep.subr.bf16.mxu0 0
          %643 = vmatpush1.bf16.msra.mxu0 0
          %644 = vmatprep.mubr.bf16.mxu0 0
          %645 = vmatmul.mubr.bf16.gmra.mrb[0].mxu0 %v610
          %v646 = vpop.f32.mrb[0].mxu0
          %v647 = vadd.f32 %v589, %v646
          %v648 = vpop.f32.mrb[0].mxu0
          %v649 = vpop.f32.mrb[0].mxu0
          %v650 = vadd.f32 %v589, %v649
          %v651 = vpop.f32.mrb[0].mxu0
          %652 = vdwg.mxu0
          %v653 = vpack.c.bf16 %v650, %v647
          %654 = vst.msk [vmem:[#allocation3] sm:$0xff] %vm608, %v653
          %656 = vrot.lane.b32.xlu0 %v653, 96
          %v657 = vpop.permute.xlu0 %656
          %659 = vst.msk [vmem:[#allocation4] sm:$0xff] %vm608, %v657
        $region88: #{tpu_custom_call.1} parent=67 // pred_fallthru
          _
        %v660 = vld [vmem:[%s555] sm:$0xf]
        %v661 = vld [vmem:[%s555 + $0x4] sm:$0xf]
        %v662 = vld [vmem:[%s4] sm:$0xf]
        %v663 = vld [vmem:[%s4 + $0x4] sm:$0xf]
        %v664 = vld [vmem:[%s4 + $0x8] sm:$0xf]
        %v665 = vld [vmem:[%s4 + $0xc] sm:$0xf]
        %v666 = vld [vmem:[#allocation9] sm:$0x1]
        %v668 = vlaneseq
        %v669 = vshrl.u32 %v668, 7
        %v670 = vsub.s32 0, %v669
        %v671 = vrot.slane %v666, %v670
        %v675 = vunpack.c.l.b16 %v660
        %v676 = vunpack.c.l.b16 %v661
        %v677 = vpack.c.b16 %v676, %v675
        %v682 = vunpack.c.l.b16 %v662
        %v683 = vunpack.c.l.b16 %v663
        %v684 = vunpack.c.l.b16 %v664
        %v685 = vunpack.c.l.b16 %v665
        %v686 = vpack.c.b16 %v683, %v682
        %v687 = vpack.c.b16 %v685, %v684
        %vm690 = vcmask 261120
        %v692 = vsel %vm690, %v677, 0
        %694 = vmatprep.subr.bf16.mxu0 0
        %695 = vmatpush1.bf16.msra.mxu0 %v686
        %696 = vmatprep.subr.bf16.mxu0 0
        %697 = vmatpush1.bf16.msra.mxu0 %v687
        %698 = vmatprep.subr.bf16.mxu0 0
        %699 = vmatpush1.bf16.msra.mxu0 0
        %700 = vmatprep.subr.bf16.mxu0 0
        %701 = vmatpush1.bf16.msra.mxu0 0
        %702 = vmatprep.subr.bf16.mxu0 0
        %703 = vmatpush1.bf16.msra.mxu0 0
        %704 = vmatprep.subr.bf16.mxu0 0
        %705 = vmatpush1.bf16.msra.mxu0 0
        %706 = vmatprep.subr.bf16.mxu0 0
        %707 = vmatpush1.bf16.msra.mxu0 0
        %708 = vmatprep.subr.bf16.mxu0 0
        %709 = vmatpush1.bf16.msra.mxu0 0
        %710 = vmatprep.subr.bf16.mxu0 0
        %711 = vmatpush1.bf16.msra.mxu0 0
        %712 = vmatprep.subr.bf16.mxu0 0
        %713 = vmatpush1.bf16.msra.mxu0 0
        %714 = vmatprep.subr.bf16.mxu0 0
        %715 = vmatpush1.bf16.msra.mxu0 0
        %716 = vmatprep.subr.bf16.mxu0 0
        %717 = vmatpush1.bf16.msra.mxu0 0
        %718 = vmatprep.subr.bf16.mxu0 0
        %719 = vmatpush1.bf16.msra.mxu0 0
        %720 = vmatprep.subr.bf16.mxu0 0
        %721 = vmatpush1.bf16.msra.mxu0 0
        %722 = vmatprep.subr.bf16.mxu0 0
        %723 = vmatpush1.bf16.msra.mxu0 0
        %724 = vmatprep.subr.bf16.mxu0 0
        %725 = vmatpush1.bf16.msra.mxu0 0
        %726 = vmatprep.mubr.bf16.mxu0 0
        %727 = vmatmul.mubr.bf16.gmra.mrb[0].mxu0 %v692
        %v728 = vpop.f32.mrb[0].mxu0
        %v729 = vadd.f32 %v671, %v728
        %v730 = vpop.f32.mrb[0].mxu0
        %v731 = vpop.f32.mrb[0].mxu0
        %v732 = vadd.f32 %v671, %v731
        %v733 = vpop.f32.mrb[0].mxu0
        %734 = vdwg.mxu0
        %v735 = vpack.c.bf16 %v732, %v729
        %736 = vst.msk [vmem:[#allocation2] sm:$0xff] %vm690, %v735
        %v737 = vld [vmem:[%s570] sm:$0xff]
        %v738 = vld [vmem:[%s570 + $0x8] sm:$0xff]
        %vm739 = vcmp.gt.f32.partialorder %v737, 0.5
        %vm740 = vcmp.gt.f32.partialorder %v738, 0.5
        %v741 = vld [vmem:[%s472] sm:$0x1]
        %vm742 = vcmp.gt.f32.partialorder %v741, 0.5
        %v743 = vsel %vm739, 1, 0
        %v744 = vsel %vm740, 1, 0
        %745 = vset.pattern.permute.xlu0 0
        %746 = vperm.xlu0 %745, %v743
        %v747 = vpop.permute.xlu0 %746
        %748 = vset.pattern.permute.xlu0 0
        %749 = vperm.xlu0 %748, %v744
        %v750 = vpop.permute.xlu0 %749
        %vm751 = vcmp.eq.s32.totalorder %v747, 1
        %vm752 = vcmp.eq.s32.totalorder %v750, 1
        %v753 = vsel %vm742, 1, 0
        %v754 = vlaneseq
        %v755 = vshrl.u32 %v754, 7
        %v756 = vsub.s32 0, %v755
        %v757 = vrot.slane %v753, %v756
        %vm758 = vcmp.eq.s32.totalorder %v757, 1
        %vm759 = vmand %vm751, %vm758
        %vm760 = vmand %vm752, %vm758
        %v761 = vld [vmem:[#allocation2] sm:$0xff]
        %v762 = vld [vmem:[#allocation3] sm:$0xff]
        %vm763 = vcmask 64512
        %v765 = vsel %vm763, %v761, 0
        %v768 = vsel %vm763, %v762, 0
        %770 = vmatprep.subr.bf16.mxu0 0
        %771 = vmatpush1.bf16.xpose.msra.mxu0 %v768
        %772 = vmatprep.subr.bf16.mxu0 0
        %773 = vmatpush1.bf16.xpose.msra.mxu0 0
        %774 = vmatprep.subr.bf16.mxu0 0
        %775 = vmatpush1.bf16.xpose.msra.mxu0 0
        %776 = vmatprep.subr.bf16.mxu0 0
        %777 = vmatpush1.bf16.xpose.msra.mxu0 0
        %778 = vmatprep.subr.bf16.mxu0 0
        %779 = vmatpush1.bf16.xpose.msra.mxu0 0
        %780 = vmatprep.subr.bf16.mxu0 0
        %781 = vmatpush1.bf16.xpose.msra.mxu0 0
        %782 = vmatprep.subr.bf16.mxu0 0
        %783 = vmatpush1.bf16.xpose.msra.mxu0 0
        %784 = vmatprep.subr.bf16.mxu0 0
        %785 = vmatpush1.bf16.xpose.msra.mxu0 0
        %786 = vmatprep.subr.bf16.mxu0 0
        %787 = vmatpush1.bf16.xpose.msra.mxu0 0
        %788 = vmatprep.subr.bf16.mxu0 0
        %789 = vmatpush1.bf16.xpose.msra.mxu0 0
        %790 = vmatprep.subr.bf16.mxu0 0
        %791 = vmatpush1.bf16.xpose.msra.mxu0 0
        %792 = vmatprep.subr.bf16.mxu0 0
        %793 = vmatpush1.bf16.xpose.msra.mxu0 0
        %794 = vmatprep.subr.bf16.mxu0 0
        %795 = vmatpush1.bf16.xpose.msra.mxu0 0
        %796 = vmatprep.subr.bf16.mxu0 0
        %797 = vmatpush1.bf16.xpose.msra.mxu0 0
        %798 = vmatprep.subr.bf16.mxu0 0
        %799 = vmatpush1.bf16.xpose.msra.mxu0 0
        %800 = vmatprep.subr.bf16.mxu0 0
        %801 = vmatpush1.bf16.xpose.msra.mxu0 0
        %802 = vmatprep.mubr.bf16.mxu0 0
        %803 = vmatmul.mubr.bf16.gmra.mrb[0].mxu0 %v765
        %v804 = vpop.f32.mrb[0].mxu0
        %v805 = vadd.f32 0.0, %v804
        %v806 = vpop.f32.mrb[0].mxu0
        %v807 = vpop.f32.mrb[0].mxu0
        %v808 = vadd.f32 0.0, %v807
        %v809 = vpop.f32.mrb[0].mxu0
        %810 = vdwg.mxu0
        %v811 = vmul.f32 %v805, 0.35355338
        %v812 = vmul.f32 %v808, 0.35355338
        %v813 = vsel %vm759, %v811, -10000.0
        %v814 = vsel %vm760, %v812, -10000.0
        %vm815 = vcmask 130048
        %v816 = vsel %vm815, %v813, -inf
        %817 = vmax.xlane.f32.xlu0 %v816
        %v818 = vpop.xlane.xlu0 %817
        %v819 = vsel %vm815, %v814, -inf
        %820 = vmax.xlane.f32.xlu0 %v819
        %v821 = vpop.xlane.xlu0 %820
        %v822 = vsub.f32 %v813, %v818
        %v823 = vsub.f32 %v814, %v821
        %v824 = vmul.f32 %v822, 1.442695
        %v825 = vpow.pop %v824
        %v826 = vmul.f32 %v823, 1.442695
        %v827 = vpow.pop %v826
        %v828 = vsel %vm815, %v825, 0.0
        %829 = vadd.xlane.f32.xlu0 %v828
        %v830 = vpop.xlane.xlu0 %829
        %v831 = vsel %vm815, %v827, 0.0
        %832 = vadd.xlane.f32.xlu0 %v831
        %v833 = vpop.xlane.xlu0 %832
        %v834 = vrcp.pop %v830
        %v835 = vrcp.pop %v833
        %v836 = vmul.f32 %v825, %v834
        %v837 = vmul.f32 %v827, %v835
        %v838 = vpack.c.bf16 %v837, %v836
        %v839 = vld [vmem:[#allocation4] sm:$0xff]
        %v841 = vsel %vm815, %v838, 0
        %843 = vmatprep.subr.bf16.mxu0 0
        %844 = vmatpush1.bf16.msra.mxu0 %v839
        %845 = vmatprep.subr.bf16.mxu0 0
        %846 = vmatpush1.bf16.msra.mxu0 0
        %847 = vmatprep.subr.bf16.mxu0 0
        %848 = vmatpush1.bf16.msra.mxu0 0
        %849 = vmatprep.subr.bf16.mxu0 0
        %850 = vmatpush1.bf16.msra.mxu0 0
        %851 = vmatprep.subr.bf16.mxu0 0
        %852 = vmatpush1.bf16.msra.mxu0 0
        %853 = vmatprep.subr.bf16.mxu0 0
        %854 = vmatpush1.bf16.msra.mxu0 0
        %855 = vmatprep.subr.bf16.mxu0 0
        %856 = vmatpush1.bf16.msra.mxu0 0
        %857 = vmatprep.subr.bf16.mxu0 0
        %858 = vmatpush1.bf16.msra.mxu0 0
        %859 = vmatprep.subr.bf16.mxu0 0
        %860 = vmatpush1.bf16.msra.mxu0 0
        %861 = vmatprep.subr.bf16.mxu0 0
        %862 = vmatpush1.bf16.msra.mxu0 0
        %863 = vmatprep.subr.bf16.mxu0 0
        %864 = vmatpush1.bf16.msra.mxu0 0
        %865 = vmatprep.subr.bf16.mxu0 0
        %866 = vmatpush1.bf16.msra.mxu0 0
        %867 = vmatprep.subr.bf16.mxu0 0
        %868 = vmatpush1.bf16.msra.mxu0 0
        %869 = vmatprep.subr.bf16.mxu0 0
        %870 = vmatpush1.bf16.msra.mxu0 0
        %871 = vmatprep.subr.bf16.mxu0 0
        %872 = vmatpush1.bf16.msra.mxu0 0
        %873 = vmatprep.subr.bf16.mxu0 0
        %874 = vmatpush1.bf16.msra.mxu0 0
        %875 = vmatprep.mubr.bf16.mxu0 0
        %876 = vmatmul.mubr.bf16.gmra.mrb[0].mxu0 %v841
        %v877 = vpop.f32.mrb[0].mxu0
        %v878 = vadd.f32 0.0, %v877
        %v879 = vpop.f32.mrb[0].mxu0
        %v880 = vpop.f32.mrb[0].mxu0
        %v881 = vadd.f32 0.0, %v880
        %v882 = vpop.f32.mrb[0].mxu0
        %883 = vdwg.mxu0
        %v884 = vpack.c.bf16 %v881, %v878
        %885 = vst.msk [vmem:[#allocation5] sm:$0xff] %vm763, %v884
        %v886 = vld [vmem:[#allocation2] sm:$0xff]
        %v887 = vld [vmem:[#allocation3] sm:$0xff]
        %889 = vrot.lane.b32.xlu0 %v886, 120
        %v890 = vpop.permute.xlu0 %889
        %892 = vrot.lane.b32.xlu0 %v887, 120
        %v893 = vpop.permute.xlu0 %892
        %v895 = vsel %vm763, %v890, 0
        %v898 = vsel %vm763, %v893, 0
        %900 = vmatprep.subr.bf16.mxu0 0
        %901 = vmatpush1.bf16.xpose.msra.mxu0 %v898
        %902 = vmatprep.subr.bf16.mxu0 0
        %903 = vmatpush1.bf16.xpose.msra.mxu0 0
        %904 = vmatprep.subr.bf16.mxu0 0
        %905 = vmatpush1.bf16.xpose.msra.mxu0 0
        %906 = vmatprep.subr.bf16.mxu0 0
        %907 = vmatpush1.bf16.xpose.msra.mxu0 0
        %908 = vmatprep.subr.bf16.mxu0 0
        %909 = vmatpush1.bf16.xpose.msra.mxu0 0
        %910 = vmatprep.subr.bf16.mxu0 0
        %911 = vmatpush1.bf16.xpose.msra.mxu0 0
        %912 = vmatprep.subr.bf16.mxu0 0
        %913 = vmatpush1.bf16.xpose.msra.mxu0 0
        %914 = vmatprep.subr.bf16.mxu0 0
        %915 = vmatpush1.bf16.xpose.msra.mxu0 0
        %916 = vmatprep.subr.bf16.mxu0 0
        %917 = vmatpush1.bf16.xpose.msra.mxu0 0
        %918 = vmatprep.subr.bf16.mxu0 0
        %919 = vmatpush1.bf16.xpose.msra.mxu0 0
        %920 = vmatprep.subr.bf16.mxu0 0
        %921 = vmatpush1.bf16.xpose.msra.mxu0 0
        %922 = vmatprep.subr.bf16.mxu0 0
        %923 = vmatpush1.bf16.xpose.msra.mxu0 0
        %924 = vmatprep.subr.bf16.mxu0 0
        %925 = vmatpush1.bf16.xpose.msra.mxu0 0
        %926 = vmatprep.subr.bf16.mxu0 0
        %927 = vmatpush1.bf16.xpose.msra.mxu0 0
        %928 = vmatprep.subr.bf16.mxu0 0
        %929 = vmatpush1.bf16.xpose.msra.mxu0 0
        %930 = vmatprep.subr.bf16.mxu0 0
        %931 = vmatpush1.bf16.xpose.msra.mxu0 0
        %932 = vmatprep.mubr.bf16.mxu0 0
        %933 = vmatmul.mubr.bf16.gmra.mrb[0].mxu0 %v895
        %v934 = vpop.f32.mrb[0].mxu0
        %v935 = vadd.f32 0.0, %v934
        %v936 = vpop.f32.mrb[0].mxu0
        %v937 = vpop.f32.mrb[0].mxu0
        %v938 = vadd.f32 0.0, %v937
        %v939 = vpop.f32.mrb[0].mxu0
        %940 = vdwg.mxu0
        %v941 = vmul.f32 %v935, 0.35355338
        %v942 = vmul.f32 %v938, 0.35355338
        %v943 = vsel %vm759, %v941, -10000.0
        %v944 = vsel %vm760, %v942, -10000.0
        %v945 = vsel %vm815, %v943, -inf
        %946 = vmax.xlane.f32.xlu0 %v945
        %v947 = vpop.xlane.xlu0 %946
        %v948 = vsel %vm815, %v944, -inf
        %949 = vmax.xlane.f32.xlu0 %v948
        %v950 = vpop.xlane.xlu0 %949
        %v951 = vsub.f32 %v943, %v947
        %v952 = vsub.f32 %v944, %v950
        %v953 = vmul.f32 %v951, 1.442695
        %v954 = vpow.pop %v953
        %v955 = vmul.f32 %v952, 1.442695
        %v956 = vpow.pop %v955
        %v957 = vsel %vm815, %v954, 0.0
        %958 = vadd.xlane.f32.xlu0 %v957
        %v959 = vpop.xlane.xlu0 %958
        %v960 = vsel %vm815, %v956, 0.0
        %961 = vadd.xlane.f32.xlu0 %v960
        %v962 = vpop.xlane.xlu0 %961
        %v963 = vrcp.pop %v959
        %v964 = vrcp.pop %v962
        %v965 = vmul.f32 %v954, %v963
        %v966 = vmul.f32 %v956, %v964
        %v967 = vpack.c.bf16 %v966, %v965
        %v968 = vld [vmem:[#allocation4] sm:$0xff]
        %970 = vrot.lane.b32.xlu0 %v968, 120
        %v971 = vpop.permute.xlu0 %970
        %v974 = vsel %vm815, %v967, 0
        %976 = vmatprep.subr.bf16.mxu0 0
        %977 = vmatpush1.bf16.msra.mxu0 %v971
        %978 = vmatprep.subr.bf16.mxu0 0
        %979 = vmatpush1.bf16.msra.mxu0 0
        %980 = vmatprep.subr.bf16.mxu0 0
        %981 = vmatpush1.bf16.msra.mxu0 0
        %982 = vmatprep.subr.bf16.mxu0 0
        %983 = vmatpush1.bf16.msra.mxu0 0
        %984 = vmatprep.subr.bf16.mxu0 0
        %985 = vmatpush1.bf16.msra.mxu0 0
        %986 = vmatprep.subr.bf16.mxu0 0
        %987 = vmatpush1.bf16.msra.mxu0 0
        %988 = vmatprep.subr.bf16.mxu0 0
        %989 = vmatpush1.bf16.msra.mxu0 0
        %990 = vmatprep.subr.bf16.mxu0 0
        %991 = vmatpush1.bf16.msra.mxu0 0
        %992 = vmatprep.subr.bf16.mxu0 0
        %993 = vmatpush1.bf16.msra.mxu0 0
        %994 = vmatprep.subr.bf16.mxu0 0
        %995 = vmatpush1.bf16.msra.mxu0 0
        %996 = vmatprep.subr.bf16.mxu0 0
        %997 = vmatpush1.bf16.msra.mxu0 0
        %998 = vmatprep.subr.bf16.mxu0 0
        %999 = vmatpush1.bf16.msra.mxu0 0
        %1000 = vmatprep.subr.bf16.mxu0 0
        %1001 = vmatpush1.bf16.msra.mxu0 0
        %1002 = vmatprep.subr.bf16.mxu0 0
        %1003 = vmatpush1.bf16.msra.mxu0 0
        %1004 = vmatprep.subr.bf16.mxu0 0
        %1005 = vmatpush1.bf16.msra.mxu0 0
        %1006 = vmatprep.subr.bf16.mxu0 0
        %1007 = vmatpush1.bf16.msra.mxu0 0
        %1008 = vmatprep.mubr.bf16.mxu0 0
        %1009 = vmatmul.mubr.bf16.gmra.mrb[0].mxu0 %v974
        %v1010 = vpop.f32.mrb[0].mxu0
        %v1011 = vadd.f32 0.0, %v1010
        %v1012 = vpop.f32.mrb[0].mxu0
        %v1013 = vpop.f32.mrb[0].mxu0
        %v1014 = vadd.f32 0.0, %v1013
        %v1015 = vpop.f32.mrb[0].mxu0
        %1016 = vdwg.mxu0
        %v1017 = vpack.c.bf16 %v1014, %v1011
        %1019 = vrot.lane.b32.xlu0 %v1017, 8
        %v1020 = vpop.permute.xlu0 %1019
        %vm1022 = vcmask 130112
        %1023 = vst.msk [vmem:[#allocation5] sm:$0xff] %vm1022, %v1020
        %v1024 = vld [vmem:[#allocation2] sm:$0xff]
        %v1025 = vld [vmem:[#allocation3] sm:$0xff]
        %1027 = vrot.lane.b32.xlu0 %v1024, 112
        %v1028 = vpop.permute.xlu0 %1027
        %1030 = vrot.lane.b32.xlu0 %v1025, 112
        %v1031 = vpop.permute.xlu0 %1030
        %v1033 = vsel %vm763, %v1028, 0
        %v1036 = vsel %vm763, %v1031, 0
        %1038 = vmatprep.subr.bf16.mxu0 0
        %1039 = vmatpush1.bf16.xpose.msra.mxu0 %v1036
        %1040 = vmatprep.subr.bf16.mxu0 0
        %1041 = vmatpush1.bf16.xpose.msra.mxu0 0
        %1042 = vmatprep.subr.bf16.mxu0 0
        %1043 = vmatpush1.bf16.xpose.msra.mxu0 0
        %1044 = vmatprep.subr.bf16.mxu0 0
        %1045 = vmatpush1.bf16.xpose.msra.mxu0 0
        %1046 = vmatprep.subr.bf16.mxu0 0
        %1047 = vmatpush1.bf16.xpose.msra.mxu0 0
        %1048 = vmatprep.subr.bf16.mxu0 0
        %1049 = vmatpush1.bf16.xpose.msra.mxu0 0
        %1050 = vmatprep.subr.bf16.mxu0 0
        %1051 = vmatpush1.bf16.xpose.msra.mxu0 0
        %1052 = vmatprep.subr.bf16.mxu0 0
        %1053 = vmatpush1.bf16.xpose.msra.mxu0 0
        %1054 = vmatprep.subr.bf16.mxu0 0
        %1055 = vmatpush1.bf16.xpose.msra.mxu0 0
        %1056 = vmatprep.subr.bf16.mxu0 0
        %1057 = vmatpush1.bf16.xpose.msra.mxu0 0
        %1058 = vmatprep.subr.bf16.mxu0 0
        %1059 = vmatpush1.bf16.xpose.msra.mxu0 0
        %1060 = vmatprep.subr.bf16.mxu0 0
        %1061 = vmatpush1.bf16.xpose.msra.mxu0 0
        %1062 = vmatprep.subr.bf16.mxu0 0
        %1063 = vmatpush1.bf16.xpose.msra.mxu0 0
        %1064 = vmatprep.subr.bf16.mxu0 0
        %1065 = vmatpush1.bf16.xpose.msra.mxu0 0
        %1066 = vmatprep.subr.bf16.mxu0 0
        %1067 = vmatpush1.bf16.xpose.msra.mxu0 0
        %1068 = vmatprep.subr.bf16.mxu0 0
        %1069 = vmatpush1.bf16.xpose.msra.mxu0 0
        %1070 = vmatprep.mubr.bf16.mxu0 0
        %1071 = vmatmul.mubr.bf16.gmra.mrb[0].mxu0 %v1033
        %v1072 = vpop.f32.mrb[0].mxu0
        %v1073 = vadd.f32 0.0, %v1072
        %v1074 = vpop.f32.mrb[0].mxu0
        %v1075 = vpop.f32.mrb[0].mxu0
        %v1076 = vadd.f32 0.0, %v1075
        %v1077 = vpop.f32.mrb[0].mxu0
        %1078 = vdwg.mxu0
        %v1079 = vmul.f32 %v1073, 0.35355338
        %v1080 = vmul.f32 %v1076, 0.35355338
        %v1081 = vsel %vm759, %v1079, -10000.0
        %v1082 = vsel %vm760, %v1080, -10000.0
        %v1083 = vsel %vm815, %v1081, -inf
        %1084 = vmax.xlane.f32.xlu0 %v1083
        %v1085 = vpop.xlane.xlu0 %1084
        %v1086 = vsel %vm815, %v1082, -inf
        %1087 = vmax.xlane.f32.xlu0 %v1086
        %v1088 = vpop.xlane.xlu0 %1087
        %v1089 = vsub.f32 %v1081, %v1085
        %v1090 = vsub.f32 %v1082, %v1088
        %v1091 = vmul.f32 %v1089, 1.442695
        %v1092 = vpow.pop %v1091
        %v1093 = vmul.f32 %v1090, 1.442695
        %v1094 = vpow.pop %v1093
        %v1095 = vsel %vm815, %v1092, 0.0
        %1096 = vadd.xlane.f32.xlu0 %v1095
        %v1097 = vpop.xlane.xlu0 %1096
        %v1098 = vsel %vm815, %v1094, 0.0
        %1099 = vadd.xlane.f32.xlu0 %v1098
        %v1100 = vpop.xlane.xlu0 %1099
        %v1101 = vrcp.pop %v1097
        %v1102 = vrcp.pop %v1100
        %v1103 = vmul.f32 %v1092, %v1101
        %v1104 = vmul.f32 %v1094, %v1102
        %v1105 = vpack.c.bf16 %v1104, %v1103
        %v1106 = vld [vmem:[#allocation4] sm:$0xff]
        %1108 = vrot.lane.b32.xlu0 %v1106, 112
        %v1109 = vpop.permute.xlu0 %1108
        %v1112 = vsel %vm815, %v1105, 0
        %1114 = vmatprep.subr.bf16.mxu0 0
        %1115 = vmatpush1.bf16.msra.mxu0 %v1109
        %1116 = vmatprep.subr.bf16.mxu0 0
        %1117 = vmatpush1.bf16.msra.mxu0 0
        %1118 = vmatprep.subr.bf16.mxu0 0
        %1119 = vmatpush1.bf16.msra.mxu0 0
        %1120 = vmatprep.subr.bf16.mxu0 0
        %1121 = vmatpush1.bf16.msra.mxu0 0
        %1122 = vmatprep.subr.bf16.mxu0 0
        %1123 = vmatpush1.bf16.msra.mxu0 0
        %1124 = vmatprep.subr.bf16.mxu0 0
        %1125 = vmatpush1.bf16.msra.mxu0 0
        %1126 = vmatprep.subr.bf16.mxu0 0
        %1127 = vmatpush1.bf16.msra.mxu0 0
        %1128 = vmatprep.subr.bf16.mxu0 0
        %1129 = vmatpush1.bf16.msra.mxu0 0
        %1130 = vmatprep.subr.bf16.mxu0 0
        %1131 = vmatpush1.bf16.msra.mxu0 0
        %1132 = vmatprep.subr.bf16.mxu0 0
        %1133 = vmatpush1.bf16.msra.mxu0 0
        %1134 = vmatprep.subr.bf16.mxu0 0
        %1135 = vmatpush1.bf16.msra.mxu0 0
        %1136 = vmatprep.subr.bf16.mxu0 0
        %1137 = vmatpush1.bf16.msra.mxu0 0
        %1138 = vmatprep.subr.bf16.mxu0 0
        %1139 = vmatpush1.bf16.msra.mxu0 0
        %1140 = vmatprep.subr.bf16.mxu0 0
        %1141 = vmatpush1.bf16.msra.mxu0 0
        %1142 = vmatprep.subr.bf16.mxu0 0
        %1143 = vmatpush1.bf16.msra.mxu0 0
        %1144 = vmatprep.subr.bf16.mxu0 0
        %1145 = vmatpush1.bf16.msra.mxu0 0
        %1146 = vmatprep.mubr.bf16.mxu0 0
        %1147 = vmatmul.mubr.bf16.gmra.mrb[0].mxu0 %v1112
        %v1148 = vpop.f32.mrb[0].mxu0
        %v1149 = vadd.f32 0.0, %v1148
        %v1150 = vpop.f32.mrb[0].mxu0
        %v1151 = vpop.f32.mrb[0].mxu0
        %v1152 = vadd.f32 0.0, %v1151
        %v1153 = vpop.f32.mrb[0].mxu0
        %1154 = vdwg.mxu0
        %v1155 = vpack.c.bf16 %v1152, %v1149
        %1157 = vrot.lane.b32.xlu0 %v1155, 16
        %v1158 = vpop.permute.xlu0 %1157
        %vm1160 = vcmask 195712
        %1161 = vst.msk [vmem:[#allocation5] sm:$0xff] %vm1160, %v1158
        %v1162 = vld [vmem:[#allocation2] sm:$0xff]
        %v1163 = vld [vmem:[#allocation3] sm:$0xff]
        %1165 = vrot.lane.b32.xlu0 %v1162, 104
        %v1166 = vpop.permute.xlu0 %1165
        %1168 = vrot.lane.b32.xlu0 %v1163, 104
        %v1169 = vpop.permute.xlu0 %1168
        %v1171 = vsel %vm763, %v1166, 0
        %v1174 = vsel %vm763, %v1169, 0
        %1176 = vmatprep.subr.bf16.mxu0 0
        %1177 = vmatpush1.bf16.xpose.msra.mxu0 %v1174
        %1178 = vmatprep.subr.bf16.mxu0 0
        %1179 = vmatpush1.bf16.xpose.msra.mxu0 0
        %1180 = vmatprep.subr.bf16.mxu0 0
        %1181 = vmatpush1.bf16.xpose.msra.mxu0 0
        %1182 = vmatprep.subr.bf16.mxu0 0
        %1183 = vmatpush1.bf16.xpose.msra.mxu0 0
        %1184 = vmatprep.subr.bf16.mxu0 0
        %1185 = vmatpush1.bf16.xpose.msra.mxu0 0
        %1186 = vmatprep.subr.bf16.mxu0 0
        %1187 = vmatpush1.bf16.xpose.msra.mxu0 0
        %1188 = vmatprep.subr.bf16.mxu0 0
        %1189 = vmatpush1.bf16.xpose.msra.mxu0 0
        %1190 = vmatprep.subr.bf16.mxu0 0
        %1191 = vmatpush1.bf16.xpose.msra.mxu0 0
        %1192 = vmatprep.subr.bf16.mxu0 0
        %1193 = vmatpush1.bf16.xpose.msra.mxu0 0
        %1194 = vmatprep.subr.bf16.mxu0 0
        %1195 = vmatpush1.bf16.xpose.msra.mxu0 0
        %1196 = vmatprep.subr.bf16.mxu0 0
        %1197 = vmatpush1.bf16.xpose.msra.mxu0 0
        %1198 = vmatprep.subr.bf16.mxu0 0
        %1199 = vmatpush1.bf16.xpose.msra.mxu0 0
        %1200 = vmatprep.subr.bf16.mxu0 0
        %1201 = vmatpush1.bf16.xpose.msra.mxu0 0
        %1202 = vmatprep.subr.bf16.mxu0 0
        %1203 = vmatpush1.bf16.xpose.msra.mxu0 0
        %1204 = vmatprep.subr.bf16.mxu0 0
        %1205 = vmatpush1.bf16.xpose.msra.mxu0 0
        %1206 = vmatprep.subr.bf16.mxu0 0
        %1207 = vmatpush1.bf16.xpose.msra.mxu0 0
        %1208 = vmatprep.mubr.bf16.mxu0 0
        %1209 = vmatmul.mubr.bf16.gmra.mrb[0].mxu0 %v1171
        %v1210 = vpop.f32.mrb[0].mxu0
        %v1211 = vadd.f32 0.0, %v1210
        %v1212 = vpop.f32.mrb[0].mxu0
        %v1213 = vpop.f32.mrb[0].mxu0
        %v1214 = vadd.f32 0.0, %v1213
        %v1215 = vpop.f32.mrb[0].mxu0
        %1216 = vdwg.mxu0
        %v1217 = vmul.f32 %v1211, 0.35355338
        %v1218 = vmul.f32 %v1214, 0.35355338
        %v1219 = vsel %vm759, %v1217, -10000.0
        %v1220 = vsel %vm760, %v1218, -10000.0
        %v1221 = vsel %vm815, %v1219, -inf
        %1222 = vmax.xlane.f32.xlu0 %v1221
        %v1223 = vpop.xlane.xlu0 %1222
        %v1224 = vsel %vm815, %v1220, -inf
        %1225 = vmax.xlane.f32.xlu0 %v1224
        %v1226 = vpop.xlane.xlu0 %1225
        %v1227 = vsub.f32 %v1219, %v1223
        %v1228 = vsub.f32 %v1220, %v1226
        %v1229 = vmul.f32 %v1227, 1.442695
        %v1230 = vpow.pop %v1229
        %v1231 = vmul.f32 %v1228, 1.442695
        %v1232 = vpow.pop %v1231
        %v1233 = vsel %vm815, %v1230, 0.0
        %1234 = vadd.xlane.f32.xlu0 %v1233
        %v1235 = vpop.xlane.xlu0 %1234
        %v1236 = vsel %vm815, %v1232, 0.0
        %1237 = vadd.xlane.f32.xlu0 %v1236
        %v1238 = vpop.xlane.xlu0 %1237
        %v1239 = vrcp.pop %v1235
        %v1240 = vrcp.pop %v1238
        %v1241 = vmul.f32 %v1230, %v1239
        %v1242 = vmul.f32 %v1232, %v1240
        %v1243 = vpack.c.bf16 %v1242, %v1241
        %v1244 = vld [vmem:[#allocation4] sm:$0xff]
        %1246 = vrot.lane.b32.xlu0 %v1244, 104
        %v1247 = vpop.permute.xlu0 %1246
        %v1250 = vsel %vm815, %v1243, 0
        %1252 = vmatprep.subr.bf16.mxu0 0
        %1253 = vmatpush1.bf16.msra.mxu0 %v1247
        %1254 = vmatprep.subr.bf16.mxu0 0
        %1255 = vmatpush1.bf16.msra.mxu0 0
        %1256 = vmatprep.subr.bf16.mxu0 0
        %1257 = vmatpush1.bf16.msra.mxu0 0
        %1258 = vmatprep.subr.bf16.mxu0 0
        %1259 = vmatpush1.bf16.msra.mxu0 0
        %1260 = vmatprep.subr.bf16.mxu0 0
        %1261 = vmatpush1.bf16.msra.mxu0 0
        %1262 = vmatprep.subr.bf16.mxu0 0
        %1263 = vmatpush1.bf16.msra.mxu0 0
        %1264 = vmatprep.subr.bf16.mxu0 0
        %1265 = vmatpush1.bf16.msra.mxu0 0
        %1266 = vmatprep.subr.bf16.mxu0 0
        %1267 = vmatpush1.bf16.msra.mxu0 0
        %1268 = vmatprep.subr.bf16.mxu0 0
        %1269 = vmatpush1.bf16.msra.mxu0 0
        %1270 = vmatprep.subr.bf16.mxu0 0
        %1271 = vmatpush1.bf16.msra.mxu0 0
        %1272 = vmatprep.subr.bf16.mxu0 0
        %1273 = vmatpush1.bf16.msra.mxu0 0
        %1274 = vmatprep.subr.bf16.mxu0 0
        %1275 = vmatpush1.bf16.msra.mxu0 0
        %1276 = vmatprep.subr.bf16.mxu0 0
        %1277 = vmatpush1.bf16.msra.mxu0 0
        %1278 = vmatprep.subr.bf16.mxu0 0
        %1279 = vmatpush1.bf16.msra.mxu0 0
        %1280 = vmatprep.subr.bf16.mxu0 0
        %1281 = vmatpush1.bf16.msra.mxu0 0
        %1282 = vmatprep.subr.bf16.mxu0 0
        %1283 = vmatpush1.bf16.msra.mxu0 0
        %1284 = vmatprep.mubr.bf16.mxu0 0
        %1285 = vmatmul.mubr.bf16.gmra.mrb[0].mxu0 %v1250
        %v1286 = vpop.f32.mrb[0].mxu0
        %v1287 = vadd.f32 0.0, %v1286
        %v1288 = vpop.f32.mrb[0].mxu0
        %v1289 = vpop.f32.mrb[0].mxu0
        %v1290 = vadd.f32 0.0, %v1289
        %v1291 = vpop.f32.mrb[0].mxu0
        %1292 = vdwg.mxu0
        %v1293 = vpack.c.bf16 %v1290, %v1287
        %1295 = vrot.lane.b32.xlu0 %v1293, 24
        %v1296 = vpop.permute.xlu0 %1295
        %vm1298 = vcmask 261312
        %1299 = vst.msk [vmem:[#allocation5] sm:$0xff] %vm1298, %v1296
        %v1300 = vld [vmem:[#allocation5] sm:$0xff]
        %v1301 = vld [vmem:[%s8] sm:$0xf]
        %v1302 = vld [vmem:[%s8 + $0x4] sm:$0xf]
        %v1303 = vld [vmem:[%s8 + $0x8] sm:$0xf]
        %v1304 = vld [vmem:[%s8 + $0xc] sm:$0xf]
        %v1305 = vld [vmem:[%s9] sm:$0x1]
        %v1307 = vlaneseq
        %v1308 = vshrl.u32 %v1307, 7
        %v1309 = vsub.s32 0, %v1308
        %v1310 = vrot.slane %v1305, %v1309
        %v1316 = vunpack.c.l.b16 %v1301
        %v1317 = vunpack.c.l.b16 %v1302
        %v1318 = vunpack.c.l.b16 %v1303
        %v1319 = vunpack.c.l.b16 %v1304
        %v1320 = vpack.c.b16 %v1317, %v1316
        %v1321 = vpack.c.b16 %v1319, %v1318
        %v1325 = vsel %vm690, %v1300, 0
        %1327 = vmatprep.subr.bf16.mxu0 0
        %1328 = vmatpush1.bf16.msra.mxu0 %v1320
        %1329 = vmatprep.subr.bf16.mxu0 0
        %1330 = vmatpush1.bf16.msra.mxu0 %v1321
        %1331 = vmatprep.subr.bf16.mxu0 0
        %1332 = vmatpush1.bf16.msra.mxu0 0
        %1333 = vmatprep.subr.bf16.mxu0 0
        %1334 = vmatpush1.bf16.msra.mxu0 0
        %1335 = vmatprep.subr.bf16.mxu0 0
        %1336 = vmatpush1.bf16.msra.mxu0 0
        %1337 = vmatprep.subr.bf16.mxu0 0
        %1338 = vmatpush1.bf16.msra.mxu0 0
        %1339 = vmatprep.subr.bf16.mxu0 0
        %1340 = vmatpush1.bf16.msra.mxu0 0
        %1341 = vmatprep.subr.bf16.mxu0 0
        %1342 = vmatpush1.bf16.msra.mxu0 0
        %1343 = vmatprep.subr.bf16.mxu0 0
        %1344 = vmatpush1.bf16.msra.mxu0 0
        %1345 = vmatprep.subr.bf16.mxu0 0
        %1346 = vmatpush1.bf16.msra.mxu0 0
        %1347 = vmatprep.subr.bf16.mxu0 0
        %1348 = vmatpush1.bf16.msra.mxu0 0
        %1349 = vmatprep.subr.bf16.mxu0 0
        %1350 = vmatpush1.bf16.msra.mxu0 0
        %1351 = vmatprep.subr.bf16.mxu0 0
        %1352 = vmatpush1.bf16.msra.mxu0 0
        %1353 = vmatprep.subr.bf16.mxu0 0
        %1354 = vmatpush1.bf16.msra.mxu0 0
        %1355 = vmatprep.subr.bf16.mxu0 0
        %1356 = vmatpush1.bf16.msra.mxu0 0
        %1357 = vmatprep.subr.bf16.mxu0 0
        %1358 = vmatpush1.bf16.msra.mxu0 0
        %1359 = vmatprep.mubr.bf16.mxu0 0
        %1360 = vmatmul.mubr.bf16.gmra.mrb[0].mxu0 %v1325
        %v1361 = vpop.f32.mrb[0].mxu0
        %v1362 = vadd.f32 %v1310, %v1361
        %v1363 = vpop.f32.mrb[0].mxu0
        %v1364 = vpop.f32.mrb[0].mxu0
        %v1365 = vadd.f32 %v1310, %v1364
        %v1366 = vpop.f32.mrb[0].mxu0
        %1367 = vdwg.mxu0
        %v1368 = vld [vmem:[%s555] sm:$0xf]
        %v1369 = vld [vmem:[%s555 + $0x4] sm:$0xf]
        %v1370 = vunpack.c.l.bf16 %v1368
        %v1371 = vunpack.c.l.bf16 %v1369
        %v1372 = vadd.f32 %v1362, %v1370
        %v1373 = vadd.f32 %v1365, %v1371
        %v1374 = vsel %vm690, %v1372, 0.0
        %1375 = vadd.xlane.f32.xlu0 %v1374
        %v1376 = vpop.xlane.xlu0 %1375
        %v1377 = vsel %vm690, %v1373, 0.0
        %1378 = vadd.xlane.f32.xlu0 %v1377
        %v1379 = vpop.xlane.xlu0 %1378
        %v1380 = vrcp.pop 32.0
        %v1381 = vmul.f32 %v1376, %v1380
        %v1382 = vmul.f32 %v1379, %v1380
        %v1383 = vsub.f32 %v1372, %v1381
        %v1384 = vsub.f32 %v1373, %v1382
        %v1385 = vmul.f32 %v1383, %v1383
        %v1386 = vmul.f32 %v1384, %v1384
        %v1387 = vsel %vm690, %v1385, 0.0
        %1388 = vadd.xlane.f32.xlu0 %v1387
        %v1389 = vpop.xlane.xlu0 %1388
        %v1390 = vsel %vm690, %v1386, 0.0
        %1391 = vadd.xlane.f32.xlu0 %v1390
        %v1392 = vpop.xlane.xlu0 %1391
        %v1393 = vmul.f32 %v1389, %v1380
        %v1394 = vmul.f32 %v1392, %v1380
        %v1395 = vadd.f32 %v1393, 1e-12
        %v1396 = vadd.f32 %v1394, 1e-12
        %v1397 = vrsqrt.pop %v1395
        %v1398 = vrsqrt.pop %v1396
        %v1399 = vmul.f32 %v1383, %v1397
        %v1400 = vmul.f32 %v1384, %v1398
        %v1401 = vld [vmem:[%s10] sm:$0x1]
        %v1403 = vlaneseq
        %v1404 = vshrl.u32 %v1403, 7
        %v1405 = vsub.s32 0, %v1404
        %v1406 = vrot.slane %v1401, %v1405
        %v1408 = vmul.f32 %v1399, %v1406
        %v1409 = vmul.f32 %v1400, %v1406
        %v1410 = vld [vmem:[%s11] sm:$0x1]
        %v1412 = vlaneseq
        %v1413 = vshrl.u32 %v1412, 7
        %v1414 = vsub.s32 0, %v1413
        %v1415 = vrot.slane %v1410, %v1414
        %v1417 = vadd.f32 %v1408, %v1415
        %v1418 = vadd.f32 %v1409, %v1415
        %v1419 = vpack.c.bf16 %v1418, %v1417
        %v1421 = vunpack.c.l.b16 %v1419
        %v1422 = vunpack.c.h.b16 %v1419
        %v1423 = vpack.c.b16 %v1421, %v1421
        %v1424 = vpack.c.b16 %v1422, %v1422
        %vm1427 = vcmask 257024
        %1428 = vst.msk [vmem:[%s546] sm:$0xf] %vm1427, %v1423
        %1429 = vst.msk [vmem:[%s546 + $0x4] sm:$0xf] %vm1427, %v1424
        %s1430 = sand.u32 %s329, 1
        %s1431 = scalar_lea.sflag [#allocation8], %s1430
        %s1432 = sand.u32 %s329, 1
        %s1433 = smul.addr %s1432, 8
        %s1434 = scalar_lea.vmem [#allocation14], %s1433
        // Predicated region
        $region89: #{tpu_custom_call.1} parent=67 // pred_check
          %p1435 = pneg %p339
        $region90: #{tpu_custom_call.1} parent=67 // pred_check_branch
          %1437 = sbr.rel (%p1435) target = $region92
        $region91: #{tpu_custom_call.1} parent=67 // pred_region
          %s1438 = smul.u32 2, %s36
          %s1440 = ssub.s32 128, 128
          %1441 = vsyncadd %s1431, %s1440
          %s1442 = smul.addr %s35, 2
          %s1443 = sadd.s32 %s1438, %s1442
          %s1444 = smul.addr %s1443, 64
          %s1445 = scalar_lea.hbm %s12, %s1444
          %s1446 = sshll.u32 %s1434, 4
          %s1447 = int_to_ptr.vmem [resolvable:$true] %s1446
          %1452 = dma.vmem_to_hbm [thread:$0]  %s1447, 128, %s1445, %s1431, 64, 64, 4
        $region92: #{tpu_custom_call.1} parent=67 // pred_fallthru
          _
      $region68: #{tpu_custom_call.1} parent=5 // pred_fallthru
        _
      %p1453 = scmp.le.s32.totalorder 2, %s26
      // Predicated region
      $region93: #{tpu_custom_call.1} parent=5 // pred_check
        %p1454 = pneg %p1453
      $region94: #{tpu_custom_call.1} parent=5 // pred_check_branch
        %1456 = sbr.rel (%p1454) target = $region96
      $region95: #{tpu_custom_call.1} parent=5 // pred_region
        %s1457 = ssub.s32 %s26, 2
        // Predicated region
        $region97: #{tpu_custom_call.1} parent=95 // pred_check
          %p1458 = pneg %p345
        $region98: #{tpu_custom_call.1} parent=95 // pred_check_branch
          %1460 = sbr.rel (%p1458) target = $region100
        $region99: #{tpu_custom_call.1} parent=95 // pred_region
          %s1461 = sand.u32 %s330, 1
          %s1462 = scalar_lea.sflag [#allocation8], %s1461
          %s1463 = sand.u32 %s330, 1
          %s1464 = smul.addr %s1463, 8
          %s1465 = scalar_lea.vmem [#allocation14], %s1464
          %1466 = dma.done %s1462, 128
        $region100: #{tpu_custom_call.1} parent=95 // pred_fallthru
          _
      $region96: #{tpu_custom_call.1} parent=5 // pred_fallthru
        _
    $region6: #{tpu_custom_call.1} parent=1 // loop_footer
      %s30 = sadd.s32 1, %s26
    $region7: #{tpu_custom_call.1} parent=1 // loop_footer_branch
      %25 = sbr.rel target = $region3
    $region8: #{tpu_custom_call.1} parent=1 // loop_exit
      _
    %1467 = vsyncpa [#allocation7], 1
    %s1468 = scalar_lea.sflag [#allocation7], 1
    %1469 = vsyncpa %s1468, 1
    %1470 = vsyncpa [#allocation10], 1
    %1471 = vsyncpa [#allocation13], 1
    %1472 = vsyncpa [#allocation8], 1
    %s1473 = scalar_lea.sflag [#allocation8], 1
    %1474 = vsyncpa %s1473, 1

</llo_original>
